<compile_context>
chip_gen: v7x
topology: tpu7x:2x2x1
jax: 0.10.0
libtpu: 0.0.40
codegen_flags: <defaults>
</compile_context>

<pallas_src>
import jax
import jax.numpy as jnp
from jax.experimental import pallas as pl
from jax.experimental.pallas import tpu as pltpu

_OUT_PAD = 128  # lane-dense padded output feature width


def _silu(x):
    # x * sigmoid(x); divide pushed onto the EUP via approx reciprocal.
    return x * pl.reciprocal(1.0 + jnp.exp(-x), approx=True)


def resnet_kernel(u_ref, t_ref,
                  w0h_ref, w0t_ref, b0_ref,
                  wh_ref, wt_ref, bh_ref,
                  wlh_ref, wlt_ref, bl_ref,
                  out_ref):
    u = u_ref[...]                       # (Bt, in_u)  f32
    lt = jnp.log(t_ref[...])             # (Bt, 1)     f32, EUP

    bt = u.shape[0]
    hid = w0h_ref.shape[1]
    outw = wlh_ref.shape[1]

    # Hoist the (Bt,1)->(Bt,H) lane broadcast of log(t) out of the layer loop.
    lt_h = jnp.broadcast_to(lt, (bt, hid))
    lt_o = lt_h if outw == hid else jnp.broadcast_to(lt, (bt, outw))

    # layer 0: Linear(cat(u, log t))
    h = (jnp.dot(u.astype(w0h_ref.dtype), w0h_ref[...],
                 preferred_element_type=jnp.float32)
         + (lt_h * w0t_ref[...] + b0_ref[...]))
    h = _silu(h)

    # hidden residual layers (static unroll; n_hidden is small)
    n_hidden = wh_ref.shape[0]
    for i in range(n_hidden):
        bias_i = lt_h * wt_ref[i] + bh_ref[i]        # reuses hoisted broadcast
        h_new = (jnp.dot(h.astype(wh_ref.dtype), wh_ref[i],
                         preferred_element_type=jnp.float32)
                 + bias_i)
        h = _silu(h + h_new)

    # final (zero-initialized, lane-padded) layer -- full-lane store
    out_ref[...] = (jnp.dot(h.astype(wlh_ref.dtype), wlh_ref[...],
                            preferred_element_type=jnp.float32)
                    + (lt_o * wlt_ref[...] + bl_ref[...]))


def make_params(key, input_dim=2, index_dim=1, hidden_dim=128, n_hidden_layers=4):
    """Deterministic init mimicking nn.Linear default (U(-1/sqrt(fan_in), .))."""
    in_dim = input_dim * 2 + index_dim
    out_dim = input_dim

    def linear(k, fan_in, fan_out):
        kw, kb = jax.random.split(k)
        bound = 1.0 / jnp.sqrt(fan_in)
        w = jax.random.uniform(kw, (fan_in, fan_out), jnp.float32, -bound, bound)
        b = jax.random.uniform(kb, (1, fan_out), jnp.float32, -bound, bound)
        return w, b

    keys = jax.random.split(key, n_hidden_layers + 2)

    # layer 0: (in_dim, hidden), split off the log(t) row
    w0, b0 = linear(keys[0], in_dim, hidden_dim)
    w0h, w0t = w0[: in_dim - index_dim], w0[in_dim - index_dim:]

    # hidden layers: (hidden + index, hidden), stacked along the leading axis
    whs, wts, bhs = [], [], []
    for i in range(n_hidden_layers):
        w, b = linear(keys[i + 1], hidden_dim + index_dim, hidden_dim)
        whs.append(w[:hidden_dim])
        wts.append(w[hidden_dim:])
        bhs.append(b)
    wh = jnp.stack(whs)          # (L, H, H)
    wt = jnp.stack(wts)          # (L, 1, H)
    bh = jnp.stack(bhs)          # (L, 1, H)

    # last layer: zero_module -> all zeros, lane-padded to _OUT_PAD features
    wlh = jnp.zeros((hidden_dim, _OUT_PAD), jnp.float32)
    wlt = jnp.zeros((1, _OUT_PAD), jnp.float32)
    bl = jnp.zeros((1, _OUT_PAD), jnp.float32)

    return dict(w0h=w0h, w0t=w0t, b0=b0, wh=wh, wt=wt, bh=bh,
                wlh=wlh, wlt=wlt, bl=bl, out_dim=out_dim)


def cast_matmul_weights(params, dtype):
    """Cast only the matmul (MXU) weights; bias / time-scale paths stay f32."""
    p = dict(params)
    for k in ("w0h", "wh", "wlh"):
        p[k] = params[k].astype(dtype)
    return p


def _choose_b_tile(batch, *, min_blocks=2, max_tile=1024):
    """Padding-aware batch tile.

    >= min_blocks balanced blocks (so v7x's two TensorCores both run), tile
    rounded up only to a sublane multiple of 8 (not 128 -- MXU M streams), and
    capped at max_tile rows so per-step VMEM stays modest.
    """
    num_blocks = max(min_blocks, pl.cdiv(batch, max_tile))
    tile = pl.cdiv(batch, num_blocks)
    tile = max(8, ((tile + 7) // 8) * 8)
    return tile


def resnet_forward(u, t, params, *, b_tile=None, vmem_limit_bytes=None):
    B, in_u = u.shape
    out_dim = params["out_dim"]

    if b_tile is None:
        b_tile = _choose_b_tile(B)
    b_tile = max(8, ((b_tile + 7) // 8) * 8)      # sublane-aligned

    num_blocks = pl.cdiv(B, b_tile)
    b_pad = num_blocks * b_tile
    if b_pad != B:
        u = jnp.pad(u, ((0, b_pad - B), (0, 0)))
        t = jnp.pad(t, (0, b_pad - B), constant_values=1.0)  # log(1)=0, safe
    u = u.astype(jnp.float32)
    t2 = t.reshape(-1, 1).astype(jnp.float32)

    def batch_spec(feat):
        return pl.BlockSpec((b_tile, feat), lambda i: (i, 0))

    def weight_spec(arr):
        nd = arr.ndim
        return pl.BlockSpec(arr.shape, lambda i, _nd=nd: (0,) * _nd)

    weight_keys = ("w0h", "w0t", "b0", "wh", "wt", "bh", "wlh", "wlt", "bl")
    weights = [params[k] for k in weight_keys]

    in_specs = [batch_spec(in_u), batch_spec(1)] + [weight_spec(w) for w in weights]
    out_specs = pl.BlockSpec((b_tile, _OUT_PAD), lambda i: (i, 0))

    # Rough per-step footprint; only set an explicit VMEM limit for huge tiles
    # (relevant on v5e's 16 MiB scoped default).
    if vmem_limit_bytes is None:
        tile_bytes = 4 * b_tile * (in_u + 1 + _OUT_PAD) * 2        # dbl-buffered
        weight_bytes = sum(int(w.size) * w.dtype.itemsize for w in weights)
        if tile_bytes + weight_bytes > (12 << 20):
            vmem_limit_bytes = min(96 << 20, 4 * (tile_bytes + weight_bytes))

    cp_kwargs = dict(dimension_semantics=("parallel",))
    if vmem_limit_bytes is not None:
        cp_kwargs["vmem_limit_bytes"] = int(vmem_limit_bytes)

    out = pl.pallas_call(
        resnet_kernel,
        out_shape=jax.ShapeDtypeStruct((b_pad, _OUT_PAD), jnp.float32),
        grid=(num_blocks,),
        in_specs=in_specs,
        out_specs=out_specs,
        compiler_params=pltpu.CompilerParams(**cp_kwargs),
    )(u, t2, *weights)

    return out[:B, :out_dim]


def resnet_reference(u, t, params):
    """Pure-JAX reference mirroring the PyTorch forward (f32, exact sigmoid)."""
    def silu(x):
        return x * jax.nn.sigmoid(x)
    logt = jnp.log(t).reshape(-1, 1)
    h = u @ params["w0h"].astype(jnp.float32) + logt * params["w0t"] + params["b0"]
    h = silu(h)
    for i in range(params["wh"].shape[0]):
        h_new = (h @ params["wh"][i].astype(jnp.float32)
                 + logt * params["wt"][i] + params["bh"][i])
        h = silu(h + h_new)
    out = h @ params["wlh"].astype(jnp.float32) + logt * params["wlt"] + params["bl"]
    return out[:, :params["out_dim"]]


if __name__ == "__main__":
    key = jax.random.PRNGKey(0)
    k_u, k_t, k_p, k_l = jax.random.split(key, 4)

    B, input_dim, hidden_dim, n_hidden_layers = 300, 2, 128, 4

    u = jax.random.normal(k_u, (B, input_dim * 2), jnp.float32)
    t = jax.random.uniform(k_t, (B,), jnp.float32, 0.1, 1.0)  # positive for log
    # TODO(synk): t <= 0 would produce -inf/NaN in log(t), same as the PyTorch module.

    params = make_params(k_p, input_dim=input_dim, hidden_dim=hidden_dim,
                         n_hidden_layers=n_hidden_layers)

    # Auto tile choice: B=300 -> 2 balanced blocks of 152 rows (4 padded rows),
    # both TensorCores busy on v7x, minimal dead work on v5e/v6e.
    out = jax.block_until_ready(resnet_forward(u, t, params))
    ref = resnet_reference(u, t, params)
    assert out.shape == (B, input_dim)
    # Spec-faithful forward: zero_module last layer -> output is exactly 0.
    assert jnp.allclose(out, ref, atol=1e-5, rtol=1e-5)
    assert jnp.allclose(out, 0.0)

    # --- test-only variant with a non-zero last layer to exercise the full
    #     matmul / bias / residual path numerically (not part of the spec).
    bound = 1.0 / jnp.sqrt(hidden_dim + 1)
    wl = jax.random.uniform(k_l, (hidden_dim + 1, input_dim), jnp.float32,
                            -bound, bound)
    params_nz = dict(params)
    params_nz["wlh"] = jnp.zeros((hidden_dim, _OUT_PAD), jnp.float32
                                 ).at[:, :input_dim].set(wl[:hidden_dim])
    params_nz["wlt"] = jnp.zeros((1, _OUT_PAD), jnp.float32
                                 ).at[:, :input_dim].set(wl[hidden_dim:])
    out_nz = jax.block_until_ready(resnet_forward(u, t, params_nz))
    ref_nz = resnet_reference(u, t, params_nz)
    # Tolerance accounts for the approx-reciprocal sigmoid (~2^-12 rel) over
    # the residual chain; still far tighter than bf16.
    assert jnp.allclose(out_nz, ref_nz, atol=5e-3, rtol=5e-3)

    # --- bf16-weight matmul path (v6e/v7x MXU recommendation), f32 accumulate
    params_bf16 = cast_matmul_weights(params_nz, jnp.bfloat16)
    out_bf16 = jax.block_until_ready(resnet_forward(u, t, params_bf16))
    assert jnp.allclose(out_bf16, ref_nz, atol=1e-1, rtol=1e-1)

    # --- explicit tile override still works (e.g. single big block on v5e/v6e)
    out_big = jax.block_until_ready(resnet_forward(u, t, params_nz, b_tile=304))
    assert jnp.allclose(out_big, ref_nz, atol=5e-3, rtol=5e-3)

    print("KERNEL_OK")
</pallas_src>

<mosaic_0001>
module attributes {stable_mosaic.version = 11 : i64} {
  func.func @resnet_kernel(%arg0: i32, %arg1: memref<152x4xf32, #tpu.memory_space<vmem>>, %arg2: memref<152x1xf32, #tpu.memory_space<vmem>>, %arg3: memref<4x128xf32, #tpu.memory_space<vmem>>, %arg4: memref<1x128xf32, #tpu.memory_space<vmem>>, %arg5: memref<1x128xf32, #tpu.memory_space<vmem>>, %arg6: memref<4x128x128xf32, #tpu.memory_space<vmem>>, %arg7: memref<4x1x128xf32, #tpu.memory_space<vmem>>, %arg8: memref<4x1x128xf32, #tpu.memory_space<vmem>>, %arg9: memref<128x128xf32, #tpu.memory_space<vmem>>, %arg10: memref<1x128xf32, #tpu.memory_space<vmem>>, %arg11: memref<1x128xf32, #tpu.memory_space<vmem>>, %arg12: memref<152x128xf32, #tpu.memory_space<vmem>>) attributes {dimension_semantics = [#tpu.dimension_semantics<parallel>], iteration_bounds = array<i64: 2>, scalar_prefetch = 0 : i64, scratch_operands = 0 : i64, tpu.core_type = #tpu.core_type<tc>, window_params = [{transform_indices = @transform_0, window_bounds = array<i64: 152, 4>}, {transform_indices = @transform_1, window_bounds = array<i64: 152, 1>}, {pipeline_mode = #tpu.pipeline_mode<synchronous>, transform_indices = @transform_2, window_bounds = array<i64: 4, 128>}, {pipeline_mode = #tpu.pipeline_mode<synchronous>, transform_indices = @transform_3, window_bounds = array<i64: 1, 128>}, {pipeline_mode = #tpu.pipeline_mode<synchronous>, transform_indices = @transform_4, window_bounds = array<i64: 1, 128>}, {pipeline_mode = #tpu.pipeline_mode<synchronous>, transform_indices = @transform_5, window_bounds = array<i64: 4, 128, 128>}, {pipeline_mode = #tpu.pipeline_mode<synchronous>, transform_indices = @transform_6, window_bounds = array<i64: 4, 1, 128>}, {pipeline_mode = #tpu.pipeline_mode<synchronous>, transform_indices = @transform_7, window_bounds = array<i64: 4, 1, 128>}, {pipeline_mode = #tpu.pipeline_mode<synchronous>, transform_indices = @transform_8, window_bounds = array<i64: 128, 128>}, {pipeline_mode = #tpu.pipeline_mode<synchronous>, transform_indices = @transform_9, window_bounds = array<i64: 1, 128>}, {pipeline_mode = #tpu.pipeline_mode<synchronous>, transform_indices = @transform_10, window_bounds = array<i64: 1, 128>}, {transform_indices = @transform_11, window_bounds = array<i64: 152, 128>}]} {
    %c0 = arith.constant 0 : index
    %c0_0 = arith.constant 0 : index
    %0 = vector.load %arg1[%c0, %c0_0] : memref<152x4xf32, #tpu.memory_space<vmem>>, vector<152x4xf32>
    %c0_1 = arith.constant 0 : index
    %c0_2 = arith.constant 0 : index
    %1 = vector.load %arg2[%c0_1, %c0_2] : memref<152x1xf32, #tpu.memory_space<vmem>>, vector<152x1xf32>
    %2 = math.log %1 : vector<152x1xf32>
    %3 = vector.shape_cast %2 : vector<152x1xf32> to vector<152x1xf32>
    %4 = vector.broadcast %3 : vector<152x1xf32> to vector<152x128xf32>
    %c0_3 = arith.constant 0 : index
    %c0_4 = arith.constant 0 : index
    %5 = vector.load %arg3[%c0_3, %c0_4] : memref<4x128xf32, #tpu.memory_space<vmem>>, vector<4x128xf32>
    %cst = arith.constant dense<0.000000e+00> : vector<152x128xf32>
    %6 = tpu.matmul %0, %5, %cst {dimension_numbers = #tpu.dot_dimension_numbers<[1], [0], [0], [1], [0, 0, 1, 1], [], []>} : vector<152x4xf32>, vector<4x128xf32>, vector<152x128xf32> -> vector<152x128xf32>
    %c0_5 = arith.constant 0 : index
    %c0_6 = arith.constant 0 : index
    %7 = vector.load %arg4[%c0_5, %c0_6] : memref<1x128xf32, #tpu.memory_space<vmem>>, vector<1x128xf32>
    %8 = vector.broadcast %7 : vector<1x128xf32> to vector<152x128xf32>
    %9 = arith.mulf %4, %8 : vector<152x128xf32>
    %c0_7 = arith.constant 0 : index
    %c0_8 = arith.constant 0 : index
    %10 = vector.load %arg5[%c0_7, %c0_8] : memref<1x128xf32, #tpu.memory_space<vmem>>, vector<1x128xf32>
    %11 = vector.broadcast %10 : vector<1x128xf32> to vector<152x128xf32>
    %12 = arith.addf %9, %11 : vector<152x128xf32>
    %13 = arith.addf %6, %12 : vector<152x128xf32>
    %cst_9 = arith.constant 0.000000e+00 : f32
    %14 = vector.broadcast %cst_9 : f32 to vector<152x128xf32>
    %15 = arith.subf %14, %13 : vector<152x128xf32>
    %16 = math.exp %15 : vector<152x128xf32>
    %cst_10 = arith.constant 1.000000e+00 : f32
    %17 = vector.broadcast %cst_10 : f32 to vector<152x128xf32>
    %18 = arith.addf %17, %16 : vector<152x128xf32>
    %19 = tpu.reciprocal %18 {approx = true} : vector<152x128xf32> -> vector<152x128xf32>
    %20 = arith.mulf %13, %19 : vector<152x128xf32>
    %c0_11 = arith.constant 0 : index
    %c0_12 = arith.constant 0 : index
    %c0_13 = arith.constant 0 : index
    %21 = vector.load %arg7[%c0_11, %c0_12, %c0_13] : memref<4x1x128xf32, #tpu.memory_space<vmem>>, vector<1x1x128xf32>
    %22 = vector.shape_cast %21 : vector<1x1x128xf32> to vector<1x128xf32>
    %23 = vector.broadcast %22 : vector<1x128xf32> to vector<152x128xf32>
    %24 = arith.mulf %4, %23 : vector<152x128xf32>
    %c0_14 = arith.constant 0 : index
    %c0_15 = arith.constant 0 : index
    %c0_16 = arith.constant 0 : index
    %25 = vector.load %arg8[%c0_14, %c0_15, %c0_16] : memref<4x1x128xf32, #tpu.memory_space<vmem>>, vector<1x1x128xf32>
    %26 = vector.shape_cast %25 : vector<1x1x128xf32> to vector<1x128xf32>
    %27 = vector.broadcast %26 : vector<1x128xf32> to vector<152x128xf32>
    %28 = arith.addf %24, %27 : vector<152x128xf32>
    %c0_17 = arith.constant 0 : index
    %c0_18 = arith.constant 0 : index
    %c0_19 = arith.constant 0 : index
    %29 = vector.load %arg6[%c0_17, %c0_18, %c0_19] : memref<4x128x128xf32, #tpu.memory_space<vmem>>, vector<1x128x128xf32>
    %30 = vector.shape_cast %29 : vector<1x128x128xf32> to vector<128x128xf32>
    %cst_20 = arith.constant dense<0.000000e+00> : vector<152x128xf32>
    %31 = tpu.matmul %20, %30, %cst_20 {dimension_numbers = #tpu.dot_dimension_numbers<[1], [0], [0], [1], [0, 0, 1, 1], [], []>} : vector<152x128xf32>, vector<128x128xf32>, vector<152x128xf32> -> vector<152x128xf32>
    %32 = arith.addf %31, %28 : vector<152x128xf32>
    %33 = arith.addf %20, %32 : vector<152x128xf32>
    %cst_21 = arith.constant 0.000000e+00 : f32
    %34 = vector.broadcast %cst_21 : f32 to vector<152x128xf32>
    %35 = arith.subf %34, %33 : vector<152x128xf32>
    %36 = math.exp %35 : vector<152x128xf32>
    %cst_22 = arith.constant 1.000000e+00 : f32
    %37 = vector.broadcast %cst_22 : f32 to vector<152x128xf32>
    %38 = arith.addf %37, %36 : vector<152x128xf32>
    %39 = tpu.reciprocal %38 {approx = true} : vector<152x128xf32> -> vector<152x128xf32>
    %40 = arith.mulf %33, %39 : vector<152x128xf32>
    %c1 = arith.constant 1 : index
    %c0_23 = arith.constant 0 : index
    %c0_24 = arith.constant 0 : index
    %41 = vector.load %arg7[%c1, %c0_23, %c0_24] : memref<4x1x128xf32, #tpu.memory_space<vmem>>, vector<1x1x128xf32>
    %42 = vector.shape_cast %41 : vector<1x1x128xf32> to vector<1x128xf32>
    %43 = vector.broadcast %42 : vector<1x128xf32> to vector<152x128xf32>
    %44 = arith.mulf %4, %43 : vector<152x128xf32>
    %c1_25 = arith.constant 1 : index
    %c0_26 = arith.constant 0 : index
    %c0_27 = arith.constant 0 : index
    %45 = vector.load %arg8[%c1_25, %c0_26, %c0_27] : memref<4x1x128xf32, #tpu.memory_space<vmem>>, vector<1x1x128xf32>
    %46 = vector.shape_cast %45 : vector<1x1x128xf32> to vector<1x128xf32>
    %47 = vector.broadcast %46 : vector<1x128xf32> to vector<152x128xf32>
    %48 = arith.addf %44, %47 : vector<152x128xf32>
    %c1_28 = arith.constant 1 : index
    %c0_29 = arith.constant 0 : index
    %c0_30 = arith.constant 0 : index
    %49 = vector.load %arg6[%c1_28, %c0_29, %c0_30] : memref<4x128x128xf32, #tpu.memory_space<vmem>>, vector<1x128x128xf32>
    %50 = vector.shape_cast %49 : vector<1x128x128xf32> to vector<128x128xf32>
    %cst_31 = arith.constant dense<0.000000e+00> : vector<152x128xf32>
    %51 = tpu.matmul %40, %50, %cst_31 {dimension_numbers = #tpu.dot_dimension_numbers<[1], [0], [0], [1], [0, 0, 1, 1], [], []>} : vector<152x128xf32>, vector<128x128xf32>, vector<152x128xf32> -> vector<152x128xf32>
    %52 = arith.addf %51, %48 : vector<152x128xf32>
    %53 = arith.addf %40, %52 : vector<152x128xf32>
    %cst_32 = arith.constant 0.000000e+00 : f32
    %54 = vector.broadcast %cst_32 : f32 to vector<152x128xf32>
    %55 = arith.subf %54, %53 : vector<152x128xf32>
    %56 = math.exp %55 : vector<152x128xf32>
    %cst_33 = arith.constant 1.000000e+00 : f32
    %57 = vector.broadcast %cst_33 : f32 to vector<152x128xf32>
    %58 = arith.addf %57, %56 : vector<152x128xf32>
    %59 = tpu.reciprocal %58 {approx = true} : vector<152x128xf32> -> vector<152x128xf32>
    %60 = arith.mulf %53, %59 : vector<152x128xf32>
    %c2 = arith.constant 2 : index
    %c0_34 = arith.constant 0 : index
    %c0_35 = arith.constant 0 : index
    %61 = vector.load %arg7[%c2, %c0_34, %c0_35] : memref<4x1x128xf32, #tpu.memory_space<vmem>>, vector<1x1x128xf32>
    %62 = vector.shape_cast %61 : vector<1x1x128xf32> to vector<1x128xf32>
    %63 = vector.broadcast %62 : vector<1x128xf32> to vector<152x128xf32>
    %64 = arith.mulf %4, %63 : vector<152x128xf32>
    %c2_36 = arith.constant 2 : index
    %c0_37 = arith.constant 0 : index
    %c0_38 = arith.constant 0 : index
    %65 = vector.load %arg8[%c2_36, %c0_37, %c0_38] : memref<4x1x128xf32, #tpu.memory_space<vmem>>, vector<1x1x128xf32>
    %66 = vector.shape_cast %65 : vector<1x1x128xf32> to vector<1x128xf32>
    %67 = vector.broadcast %66 : vector<1x128xf32> to vector<152x128xf32>
    %68 = arith.addf %64, %67 : vector<152x128xf32>
    %c2_39 = arith.constant 2 : index
    %c0_40 = arith.constant 0 : index
    %c0_41 = arith.constant 0 : index
    %69 = vector.load %arg6[%c2_39, %c0_40, %c0_41] : memref<4x128x128xf32, #tpu.memory_space<vmem>>, vector<1x128x128xf32>
    %70 = vector.shape_cast %69 : vector<1x128x128xf32> to vector<128x128xf32>
    %cst_42 = arith.constant dense<0.000000e+00> : vector<152x128xf32>
    %71 = tpu.matmul %60, %70, %cst_42 {dimension_numbers = #tpu.dot_dimension_numbers<[1], [0], [0], [1], [0, 0, 1, 1], [], []>} : vector<152x128xf32>, vector<128x128xf32>, vector<152x128xf32> -> vector<152x128xf32>
    %72 = arith.addf %71, %68 : vector<152x128xf32>
    %73 = arith.addf %60, %72 : vector<152x128xf32>
    %cst_43 = arith.constant 0.000000e+00 : f32
    %74 = vector.broadcast %cst_43 : f32 to vector<152x128xf32>
    %75 = arith.subf %74, %73 : vector<152x128xf32>
    %76 = math.exp %75 : vector<152x128xf32>
    %cst_44 = arith.constant 1.000000e+00 : f32
    %77 = vector.broadcast %cst_44 : f32 to vector<152x128xf32>
    %78 = arith.addf %77, %76 : vector<152x128xf32>
    %79 = tpu.reciprocal %78 {approx = true} : vector<152x128xf32> -> vector<152x128xf32>
    %80 = arith.mulf %73, %79 : vector<152x128xf32>
    %c3 = arith.constant 3 : index
    %c0_45 = arith.constant 0 : index
    %c0_46 = arith.constant 0 : index
    %81 = vector.load %arg7[%c3, %c0_45, %c0_46] : memref<4x1x128xf32, #tpu.memory_space<vmem>>, vector<1x1x128xf32>
    %82 = vector.shape_cast %81 : vector<1x1x128xf32> to vector<1x128xf32>
    %83 = vector.broadcast %82 : vector<1x128xf32> to vector<152x128xf32>
    %84 = arith.mulf %4, %83 : vector<152x128xf32>
    %c3_47 = arith.constant 3 : index
    %c0_48 = arith.constant 0 : index
    %c0_49 = arith.constant 0 : index
    %85 = vector.load %arg8[%c3_47, %c0_48, %c0_49] : memref<4x1x128xf32, #tpu.memory_space<vmem>>, vector<1x1x128xf32>
    %86 = vector.shape_cast %85 : vector<1x1x128xf32> to vector<1x128xf32>
    %87 = vector.broadcast %86 : vector<1x128xf32> to vector<152x128xf32>
    %88 = arith.addf %84, %87 : vector<152x128xf32>
    %c3_50 = arith.constant 3 : index
    %c0_51 = arith.constant 0 : index
    %c0_52 = arith.constant 0 : index
    %89 = vector.load %arg6[%c3_50, %c0_51, %c0_52] : memref<4x128x128xf32, #tpu.memory_space<vmem>>, vector<1x128x128xf32>
    %90 = vector.shape_cast %89 : vector<1x128x128xf32> to vector<128x128xf32>
    %cst_53 = arith.constant dense<0.000000e+00> : vector<152x128xf32>
    %91 = tpu.matmul %80, %90, %cst_53 {dimension_numbers = #tpu.dot_dimension_numbers<[1], [0], [0], [1], [0, 0, 1, 1], [], []>} : vector<152x128xf32>, vector<128x128xf32>, vector<152x128xf32> -> vector<152x128xf32>
    %92 = arith.addf %91, %88 : vector<152x128xf32>
    %93 = arith.addf %80, %92 : vector<152x128xf32>
    %cst_54 = arith.constant 0.000000e+00 : f32
    %94 = vector.broadcast %cst_54 : f32 to vector<152x128xf32>
    %95 = arith.subf %94, %93 : vector<152x128xf32>
    %96 = math.exp %95 : vector<152x128xf32>
    %cst_55 = arith.constant 1.000000e+00 : f32
    %97 = vector.broadcast %cst_55 : f32 to vector<152x128xf32>
    %98 = arith.addf %97, %96 : vector<152x128xf32>
    %99 = tpu.reciprocal %98 {approx = true} : vector<152x128xf32> -> vector<152x128xf32>
    %100 = arith.mulf %93, %99 : vector<152x128xf32>
    %c0_56 = arith.constant 0 : index
    %c0_57 = arith.constant 0 : index
    %101 = vector.load %arg9[%c0_56, %c0_57] : memref<128x128xf32, #tpu.memory_space<vmem>>, vector<128x128xf32>
    %cst_58 = arith.constant dense<0.000000e+00> : vector<152x128xf32>
    %102 = tpu.matmul %100, %101, %cst_58 {dimension_numbers = #tpu.dot_dimension_numbers<[1], [0], [0], [1], [0, 0, 1, 1], [], []>} : vector<152x128xf32>, vector<128x128xf32>, vector<152x128xf32> -> vector<152x128xf32>
    %c0_59 = arith.constant 0 : index
    %c0_60 = arith.constant 0 : index
    %103 = vector.load %arg10[%c0_59, %c0_60] : memref<1x128xf32, #tpu.memory_space<vmem>>, vector<1x128xf32>
    %104 = vector.broadcast %103 : vector<1x128xf32> to vector<152x128xf32>
    %105 = arith.mulf %4, %104 : vector<152x128xf32>
    %c0_61 = arith.constant 0 : index
    %c0_62 = arith.constant 0 : index
    %106 = vector.load %arg11[%c0_61, %c0_62] : memref<1x128xf32, #tpu.memory_space<vmem>>, vector<1x128xf32>
    %107 = vector.broadcast %106 : vector<1x128xf32> to vector<152x128xf32>
    %108 = arith.addf %105, %107 : vector<152x128xf32>
    %109 = arith.addf %102, %108 : vector<152x128xf32>
    %c0_63 = arith.constant 0 : index
    %c0_64 = arith.constant 0 : index
    %110 = vector.load %arg12[%c0_63, %c0_64] : memref<152x128xf32, #tpu.memory_space<vmem>>, vector<152x128xf32>
    tpu.vector_store %arg12[%c0_63, %c0_64], %109 {strides = array<i32>} : memref<152x128xf32, #tpu.memory_space<vmem>>, vector<152x128xf32>,
    return
  }
  func.func @transform_0(%arg0: i32) -> (i32, i32) {
    %c0_i32 = arith.constant 0 : i32
    %c0_i32_0 = arith.constant 0 : i32
    return %arg0, %c0_i32 : i32, i32
  }
  func.func @transform_1(%arg0: i32) -> (i32, i32) {
    %c0_i32 = arith.constant 0 : i32
    %c0_i32_0 = arith.constant 0 : i32
    return %arg0, %c0_i32 : i32, i32
  }
  func.func @transform_2(%arg0: i32) -> (i32, i32) {
    %c0_i32 = arith.constant 0 : i32
    %c0_i32_0 = arith.constant 0 : i32
    %c0_i32_1 = arith.constant 0 : i32
    return %c0_i32, %c0_i32_0 : i32, i32
  }
  func.func @transform_3(%arg0: i32) -> (i32, i32) {
    %c0_i32 = arith.constant 0 : i32
    %c0_i32_0 = arith.constant 0 : i32
    %c0_i32_1 = arith.constant 0 : i32
    return %c0_i32, %c0_i32_0 : i32, i32
  }
  func.func @transform_4(%arg0: i32) -> (i32, i32) {
    %c0_i32 = arith.constant 0 : i32
    %c0_i32_0 = arith.constant 0 : i32
    %c0_i32_1 = arith.constant 0 : i32
    return %c0_i32, %c0_i32_0 : i32, i32
  }
  func.func @transform_5(%arg0: i32) -> (i32, i32, i32) {
    %c0_i32 = arith.constant 0 : i32
    %c0_i32_0 = arith.constant 0 : i32
    %c0_i32_1 = arith.constant 0 : i32
    %c0_i32_2 = arith.constant 0 : i32
    return %c0_i32, %c0_i32_0, %c0_i32_1 : i32, i32, i32
  }
  func.func @transform_6(%arg0: i32) -> (i32, i32, i32) {
    %c0_i32 = arith.constant 0 : i32
    %c0_i32_0 = arith.constant 0 : i32
    %c0_i32_1 = arith.constant 0 : i32
    %c0_i32_2 = arith.constant 0 : i32
    return %c0_i32, %c0_i32_0, %c0_i32_1 : i32, i32, i32
  }
  func.func @transform_7(%arg0: i32) -> (i32, i32, i32) {
    %c0_i32 = arith.constant 0 : i32
    %c0_i32_0 = arith.constant 0 : i32
    %c0_i32_1 = arith.constant 0 : i32
    %c0_i32_2 = arith.constant 0 : i32
    return %c0_i32, %c0_i32_0, %c0_i32_1 : i32, i32, i32
  }
  func.func @transform_8(%arg0: i32) -> (i32, i32) {
    %c0_i32 = arith.constant 0 : i32
    %c0_i32_0 = arith.constant 0 : i32
    %c0_i32_1 = arith.constant 0 : i32
    return %c0_i32, %c0_i32_0 : i32, i32
  }
  func.func @transform_9(%arg0: i32) -> (i32, i32) {
    %c0_i32 = arith.constant 0 : i32
    %c0_i32_0 = arith.constant 0 : i32
    %c0_i32_1 = arith.constant 0 : i32
    return %c0_i32, %c0_i32_0 : i32, i32
  }
  func.func @transform_10(%arg0: i32) -> (i32, i32) {
    %c0_i32 = arith.constant 0 : i32
    %c0_i32_0 = arith.constant 0 : i32
    %c0_i32_1 = arith.constant 0 : i32
    return %c0_i32, %c0_i32_0 : i32, i32
  }
  func.func @transform_11(%arg0: i32) -> (i32, i32) {
    %c0_i32 = arith.constant 0 : i32
    %c0_i32_0 = arith.constant 0 : i32
    return %arg0, %c0_i32 : i32, i32
  }
}

</mosaic_0001>

<llo_original>
// kernel: tpu_custom_call.1
$region0: #{tpu_custom_call.1}
  #allocation0 [shape = 'u32[]', space=smem, size = 0x4, offset = 0x4, fixed_abs, tag = 'smem constant byte address 0x4 - core index']
  #allocation1 [shape = 'u32[144,128]{1,0:T(1,128)}', space=vmem, size = 0x12000, scoped, tag = 'internal scratch']
  %s0 = inlined_call_operand.vmem [shape: f32[304,4], index: 0, kind: input, shape index: {}]
  %s1 = inlined_call_operand.vmem [shape: f32[304,1], index: 1, kind: input, shape index: {}]
  %s2 = inlined_call_operand.hbm [shape: f32[4,128], index: 2, kind: input, shape index: {}]
  %s3 = inlined_call_operand.vmem [shape: f32[1,128], index: 3, kind: input, shape index: {}]
  %s4 = inlined_call_operand.hbm [shape: f32[1,128], index: 4, kind: input, shape index: {}]
  %s5 = inlined_call_operand.vmem [shape: f32[4,128,128], index: 5, kind: input, shape index: {}]
  %s6 = inlined_call_operand.vmem [shape: f32[4,1,128], index: 6, kind: input, shape index: {}]
  %s7 = inlined_call_operand.hbm [shape: f32[4,1,128], index: 7, kind: input, shape index: {}]
  %s8 = inlined_call_operand.vmem [shape: f32[128,128], index: 8, kind: input, shape index: {}]
  %s9 = inlined_call_operand.vmem [shape: f32[1,128], index: 9, kind: input, shape index: {}]
  %s10 = inlined_call_operand.vmem [shape: f32[1,128], index: 10, kind: input, shape index: {}]
  %s11 = inlined_call_operand.hbm [shape: f32[304,128], index: 11, kind: output, shape index: {}]
  %s12 = sld [smem:[#allocation0]]
  $region89: #{tpu_custom_call.1} parent=0
    _
  %s14 = ssub.s32 1, %s12
  %s15 = scalar_select 0, %s14, %s12
  $region1: #{tpu_custom_call.1} parent=0
    #allocation2 [shape = 'u8[2048]{0}', space=vmem, size = 0x800, scoped, tag = 'input window, operand 2, single buffered']
    #allocation3 [shape = 's32[2]{0}', space=sflag, size = 0x8, scoped, tag = 'scoped memory for tpu_custom_call.1']
    #allocation4 [shape = 's32[2]{0}', space=sflag, size = 0x8, scoped, tag = 'scoped memory for tpu_custom_call.1']
    #allocation5 [shape = 'u8[512]{0}', space=vmem, size = 0x400, scoped, tag = 'input window, operand 4, single buffered']
    #allocation6 [shape = 's32[1]{0}', space=sflag, size = 0x4, scoped, tag = 'scoped memory for tpu_custom_call.1']
    #allocation7 [shape = 'u8[2048]{0}', space=vmem, size = 0x800, scoped, tag = 'input window, operand 7, single buffered']
    #allocation8 [shape = 'u8[155648]{0}', space=vmem, size = 0x26000, scoped, tag = 'output window, operand 0']
    %16 = vsyncpa [#allocation3], 0
    %17 = vsyncpa [#allocation6], 0
    %18 = vsyncpa [#allocation4], 0
    %s19 = scalar_lea.sflag [#allocation4], 1
    %20 = vsyncpa %s19, 0
    loop: start=0, step=1, limit=4
    $region2: #{tpu_custom_call.1} parent=1 // loop_pre_header
      _
    $region3: #{tpu_custom_call.1} parent=1 // loop_header
      %s22 = sphi 0, %s26
      %p23 = scmp.ge.s32.totalorder %s22, 4
      %s32 = sphi 0, %s34
      %s35 = sphi 0, %s32
      %s36 = sphi 0, %s35
      %s52 = sphi 0, %s36
      %s58 = sphi 0, %s60
      %s61 = sphi 0, %s58
      %s62 = sphi 0, %s61
      %s78 = sphi 0, %s62
      %s82 = sphi 0, %s82
      %s84 = sphi 0, %s82
      %s85 = sphi 0, %s84
      %s99 = sphi 0, %s85
      %s103 = sphi 0, %s103
      %s105 = sphi 0, %s103
      %s106 = sphi 0, %s105
      %s120 = sphi 0, %s106
      %s124 = sphi 0, %s124
      %s126 = sphi 0, %s124
      %s127 = sphi 0, %s126
      %s141 = sphi 0, %s127
      %s145 = sphi 0, %s145
      %s147 = sphi 0, %s145
      %s148 = sphi 0, %s147
      %s162 = sphi 0, %s148
      %s166 = sphi 0, %s166
      %s168 = sphi 0, %s166
      %s169 = sphi 0, %s168
      %s183 = sphi 0, %s169
      %s187 = sphi 0, %s187
      %s189 = sphi 0, %s187
      %s190 = sphi 0, %s189
      %s204 = sphi 0, %s190
      %s208 = sphi 0, %s208
      %s210 = sphi 0, %s208
      %s211 = sphi 0, %s210
      %s225 = sphi 0, %s211
      %s229 = sphi 0, %s229
      %s231 = sphi 0, %s229
      %s232 = sphi 0, %s231
      %s246 = sphi 0, %s232
      %s250 = sphi 0, %s250
      %s252 = sphi 0, %s250
      %s253 = sphi 0, %s252
      %s267 = sphi 0, %s253
      %s273 = sphi 0, %s275
      %s276 = sphi 0, %s273
      %s277 = sphi 0, %s276
      %s293 = sphi 0, %s277
    $region4: #{tpu_custom_call.1} parent=1 // loop_header_branch
      %25 = sbr.rel (%p23) target = $region8
    $region5: #{tpu_custom_call.1} parent=1 // loop_body
      %s27 = ssub.s32 %s22, 1
      %s28 = ssub.s32 %s22, 2
      %s29 = sadd.s32 %s22, 1
      %s30 = ssub.s32 %s22, %s29
      %p31 = scmp.eq.s32.totalorder %s30, 0
      %s33 = sadd.s32 %s32, 1
      %s34 = scalar_select %p31, %s32, %s33
      %p37 = pneg %p31
      %p38 = scmp.eq.s32.totalorder %s22, 1
      %p39 = por %p37, %p38
      %p40 = scmp.ne.s32.totalorder %s32, %s35
      %p41 = scmp.eq.s32.totalorder %s22, 0
      %p42 = por %p40, %p41
      %p43 = scmp.ne.s32.totalorder %s32, %s35
      %p44 = scmp.eq.s32.totalorder %s27, 1
      %p45 = por %p43, %p44
      %p46 = scmp.ne.s32.totalorder %s35, %s36
      %p47 = scmp.eq.s32.totalorder %s27, 0
      %p48 = por %p46, %p47
      %p49 = scmp.ne.s32.totalorder %s35, %s36
      %p50 = scmp.eq.s32.totalorder %s28, 1
      %p51 = por %p49, %p50
      %p53 = scmp.ne.s32.totalorder %s36, %s52
      %p54 = scmp.eq.s32.totalorder %s28, 0
      %p55 = por %p53, %p54
      %s56 = ssub.s32 %s22, %s29
      %p57 = scmp.eq.s32.totalorder %s56, 0
      %s59 = sadd.s32 %s58, 1
      %s60 = scalar_select %p57, %s58, %s59
      %p63 = pneg %p57
      %p64 = scmp.eq.s32.totalorder %s22, 1
      %p65 = por %p63, %p64
      %p66 = scmp.ne.s32.totalorder %s58, %s61
      %p67 = scmp.eq.s32.totalorder %s22, 0
      %p68 = por %p66, %p67
      %p69 = scmp.ne.s32.totalorder %s58, %s61
      %p70 = scmp.eq.s32.totalorder %s27, 1
      %p71 = por %p69, %p70
      %p72 = scmp.ne.s32.totalorder %s61, %s62
      %p73 = scmp.eq.s32.totalorder %s27, 0
      %p74 = por %p72, %p73
      %p75 = scmp.ne.s32.totalorder %s61, %s62
      %p76 = scmp.eq.s32.totalorder %s28, 1
      %p77 = por %p75, %p76
      %p79 = scmp.ne.s32.totalorder %s62, %s78
      %p80 = scmp.eq.s32.totalorder %s28, 0
      %p81 = por %p79, %p80
      %s83 = sadd.s32 %s82, 1
      %p86 = scmp.eq.s32.totalorder %s22, 1
      %p87 = scmp.ne.s32.totalorder %s82, %s84
      %p88 = scmp.eq.s32.totalorder %s22, 0
      %p89 = por %p87, %p88
      %p90 = scmp.ne.s32.totalorder %s82, %s84
      %p91 = scmp.eq.s32.totalorder %s27, 1
      %p92 = por %p90, %p91
      %p93 = scmp.ne.s32.totalorder %s84, %s85
      %p94 = scmp.eq.s32.totalorder %s27, 0
      %p95 = por %p93, %p94
      %p96 = scmp.ne.s32.totalorder %s84, %s85
      %p97 = scmp.eq.s32.totalorder %s28, 1
      %p98 = por %p96, %p97
      %p100 = scmp.ne.s32.totalorder %s85, %s99
      %p101 = scmp.eq.s32.totalorder %s28, 0
      %p102 = por %p100, %p101
      %s104 = sadd.s32 %s103, 1
      %p107 = scmp.eq.s32.totalorder %s22, 1
      %p108 = scmp.ne.s32.totalorder %s103, %s105
      %p109 = scmp.eq.s32.totalorder %s22, 0
      %p110 = por %p108, %p109
      %p111 = scmp.ne.s32.totalorder %s103, %s105
      %p112 = scmp.eq.s32.totalorder %s27, 1
      %p113 = por %p111, %p112
      %p114 = scmp.ne.s32.totalorder %s105, %s106
      %p115 = scmp.eq.s32.totalorder %s27, 0
      %p116 = por %p114, %p115
      %p117 = scmp.ne.s32.totalorder %s105, %s106
      %p118 = scmp.eq.s32.totalorder %s28, 1
      %p119 = por %p117, %p118
      %p121 = scmp.ne.s32.totalorder %s106, %s120
      %p122 = scmp.eq.s32.totalorder %s28, 0
      %p123 = por %p121, %p122
      %s125 = sadd.s32 %s124, 1
      %p128 = scmp.eq.s32.totalorder %s22, 1
      %p129 = scmp.ne.s32.totalorder %s124, %s126
      %p130 = scmp.eq.s32.totalorder %s22, 0
      %p131 = por %p129, %p130
      %p132 = scmp.ne.s32.totalorder %s124, %s126
      %p133 = scmp.eq.s32.totalorder %s27, 1
      %p134 = por %p132, %p133
      %p135 = scmp.ne.s32.totalorder %s126, %s127
      %p136 = scmp.eq.s32.totalorder %s27, 0
      %p137 = por %p135, %p136
      %p138 = scmp.ne.s32.totalorder %s126, %s127
      %p139 = scmp.eq.s32.totalorder %s28, 1
      %p140 = por %p138, %p139
      %p142 = scmp.ne.s32.totalorder %s127, %s141
      %p143 = scmp.eq.s32.totalorder %s28, 0
      %p144 = por %p142, %p143
      %s146 = sadd.s32 %s145, 1
      %p149 = scmp.eq.s32.totalorder %s22, 1
      %p150 = scmp.ne.s32.totalorder %s145, %s147
      %p151 = scmp.eq.s32.totalorder %s22, 0
      %p152 = por %p150, %p151
      %p153 = scmp.ne.s32.totalorder %s145, %s147
      %p154 = scmp.eq.s32.totalorder %s27, 1
      %p155 = por %p153, %p154
      %p156 = scmp.ne.s32.totalorder %s147, %s148
      %p157 = scmp.eq.s32.totalorder %s27, 0
      %p158 = por %p156, %p157
      %p159 = scmp.ne.s32.totalorder %s147, %s148
      %p160 = scmp.eq.s32.totalorder %s28, 1
      %p161 = por %p159, %p160
      %p163 = scmp.ne.s32.totalorder %s148, %s162
      %p164 = scmp.eq.s32.totalorder %s28, 0
      %p165 = por %p163, %p164
      %s167 = sadd.s32 %s166, 1
      %p170 = scmp.eq.s32.totalorder %s22, 1
      %p171 = scmp.ne.s32.totalorder %s166, %s168
      %p172 = scmp.eq.s32.totalorder %s22, 0
      %p173 = por %p171, %p172
      %p174 = scmp.ne.s32.totalorder %s166, %s168
      %p175 = scmp.eq.s32.totalorder %s27, 1
      %p176 = por %p174, %p175
      %p177 = scmp.ne.s32.totalorder %s168, %s169
      %p178 = scmp.eq.s32.totalorder %s27, 0
      %p179 = por %p177, %p178
      %p180 = scmp.ne.s32.totalorder %s168, %s169
      %p181 = scmp.eq.s32.totalorder %s28, 1
      %p182 = por %p180, %p181
      %p184 = scmp.ne.s32.totalorder %s169, %s183
      %p185 = scmp.eq.s32.totalorder %s28, 0
      %p186 = por %p184, %p185
      %s188 = sadd.s32 %s187, 1
      %p191 = scmp.eq.s32.totalorder %s22, 1
      %p192 = scmp.ne.s32.totalorder %s187, %s189
      %p193 = scmp.eq.s32.totalorder %s22, 0
      %p194 = por %p192, %p193
      %p195 = scmp.ne.s32.totalorder %s187, %s189
      %p196 = scmp.eq.s32.totalorder %s27, 1
      %p197 = por %p195, %p196
      %p198 = scmp.ne.s32.totalorder %s189, %s190
      %p199 = scmp.eq.s32.totalorder %s27, 0
      %p200 = por %p198, %p199
      %p201 = scmp.ne.s32.totalorder %s189, %s190
      %p202 = scmp.eq.s32.totalorder %s28, 1
      %p203 = por %p201, %p202
      %p205 = scmp.ne.s32.totalorder %s190, %s204
      %p206 = scmp.eq.s32.totalorder %s28, 0
      %p207 = por %p205, %p206
      %s209 = sadd.s32 %s208, 1
      %p212 = scmp.eq.s32.totalorder %s22, 1
      %p213 = scmp.ne.s32.totalorder %s208, %s210
      %p214 = scmp.eq.s32.totalorder %s22, 0
      %p215 = por %p213, %p214
      %p216 = scmp.ne.s32.totalorder %s208, %s210
      %p217 = scmp.eq.s32.totalorder %s27, 1
      %p218 = por %p216, %p217
      %p219 = scmp.ne.s32.totalorder %s210, %s211
      %p220 = scmp.eq.s32.totalorder %s27, 0
      %p221 = por %p219, %p220
      %p222 = scmp.ne.s32.totalorder %s210, %s211
      %p223 = scmp.eq.s32.totalorder %s28, 1
      %p224 = por %p222, %p223
      %p226 = scmp.ne.s32.totalorder %s211, %s225
      %p227 = scmp.eq.s32.totalorder %s28, 0
      %p228 = por %p226, %p227
      %s230 = sadd.s32 %s229, 1
      %p233 = scmp.eq.s32.totalorder %s22, 1
      %p234 = scmp.ne.s32.totalorder %s229, %s231
      %p235 = scmp.eq.s32.totalorder %s22, 0
      %p236 = por %p234, %p235
      %p237 = scmp.ne.s32.totalorder %s229, %s231
      %p238 = scmp.eq.s32.totalorder %s27, 1
      %p239 = por %p237, %p238
      %p240 = scmp.ne.s32.totalorder %s231, %s232
      %p241 = scmp.eq.s32.totalorder %s27, 0
      %p242 = por %p240, %p241
      %p243 = scmp.ne.s32.totalorder %s231, %s232
      %p244 = scmp.eq.s32.totalorder %s28, 1
      %p245 = por %p243, %p244
      %p247 = scmp.ne.s32.totalorder %s232, %s246
      %p248 = scmp.eq.s32.totalorder %s28, 0
      %p249 = por %p247, %p248
      %s251 = sadd.s32 %s250, 1
      %p254 = scmp.eq.s32.totalorder %s22, 1
      %p255 = scmp.ne.s32.totalorder %s250, %s252
      %p256 = scmp.eq.s32.totalorder %s22, 0
      %p257 = por %p255, %p256
      %p258 = scmp.ne.s32.totalorder %s250, %s252
      %p259 = scmp.eq.s32.totalorder %s27, 1
      %p260 = por %p258, %p259
      %p261 = scmp.ne.s32.totalorder %s252, %s253
      %p262 = scmp.eq.s32.totalorder %s27, 0
      %p263 = por %p261, %p262
      %p264 = scmp.ne.s32.totalorder %s252, %s253
      %p265 = scmp.eq.s32.totalorder %s28, 1
      %p266 = por %p264, %p265
      %p268 = scmp.ne.s32.totalorder %s253, %s267
      %p269 = scmp.eq.s32.totalorder %s28, 0
      %p270 = por %p268, %p269
      %s271 = ssub.s32 %s22, %s29
      %p272 = scmp.eq.s32.totalorder %s271, 0
      %s274 = sadd.s32 %s273, 1
      %s275 = scalar_select %p272, %s273, %s274
      %p278 = pneg %p272
      %p279 = scmp.eq.s32.totalorder %s22, 1
      %p280 = por %p278, %p279
      %p281 = scmp.ne.s32.totalorder %s273, %s276
      %p282 = scmp.eq.s32.totalorder %s22, 0
      %p283 = por %p281, %p282
      %p284 = scmp.ne.s32.totalorder %s273, %s276
      %p285 = scmp.eq.s32.totalorder %s27, 1
      %p286 = por %p284, %p285
      %p287 = scmp.ne.s32.totalorder %s276, %s277
      %p288 = scmp.eq.s32.totalorder %s27, 0
      %p289 = por %p287, %p288
      %p290 = scmp.ne.s32.totalorder %s276, %s277
      %p291 = scmp.eq.s32.totalorder %s28, 1
      %p292 = por %p290, %p291
      %p294 = scmp.ne.s32.totalorder %s277, %s293
      %p295 = scmp.eq.s32.totalorder %s28, 0
      %p296 = por %p294, %p295
      %p297 = scmp.le.s32.totalorder 1, %s22
      %p298 = scmp.lt.s32.totalorder %s22, 3
      %p299 = pnand %p297, %p298
      %p300 = pneg %p299
      // Predicated region
      $region9: #{tpu_custom_call.1} parent=5 // pred_check
        _
      $region10: #{tpu_custom_call.1} parent=5 // pred_check_branch
        %302 = sbr.rel (%p299) target = $region12
      $region11: #{tpu_custom_call.1} parent=5 // pred_region
        %s303 = ssub.s32 %s22, 1
        // Predicated region
        $region13: #{tpu_custom_call.1} parent=11 // pred_check
          %p304 = pneg %p95
        $region14: #{tpu_custom_call.1} parent=11 // pred_check_branch
          %306 = sbr.rel (%p304) target = $region16
        $region15: #{tpu_custom_call.1} parent=11 // pred_region
          %s308 = ssub.s32 64, 64
          %309 = vsyncadd [#allocation3], %s308
          %s311 = sshll.u32 [#allocation2], 4
          %s312 = int_to_ptr.vmem [resolvable:$true] %s311
          %314 = dma.hbm_to_vmem [thread:$0]  %s2, 64, %s312, [#allocation3]
        $region16: #{tpu_custom_call.1} parent=11 // pred_fallthru
          _
        // Predicated region
        $region17: #{tpu_custom_call.1} parent=11 // pred_check
          %p315 = pneg %p116
        $region18: #{tpu_custom_call.1} parent=11 // pred_check_branch
          %317 = sbr.rel (%p315) target = $region20
        $region19: #{tpu_custom_call.1} parent=11 // pred_region
          _
        $region20: #{tpu_custom_call.1} parent=11 // pred_fallthru
          _
        // Predicated region
        $region21: #{tpu_custom_call.1} parent=11 // pred_check
          %p318 = pneg %p137
        $region22: #{tpu_custom_call.1} parent=11 // pred_check_branch
          %320 = sbr.rel (%p318) target = $region24
        $region23: #{tpu_custom_call.1} parent=11 // pred_region
          %s322 = ssub.s32 16, 16
          %323 = vsyncadd [#allocation6], %s322
          %s325 = sshll.u32 [#allocation5], 4
          %s326 = int_to_ptr.vmem [resolvable:$true] %s325
          %328 = dma.hbm_to_vmem [thread:$0]  %s4, 16, %s326, [#allocation6]
        $region24: #{tpu_custom_call.1} parent=11 // pred_fallthru
          _
        // Predicated region
        $region25: #{tpu_custom_call.1} parent=11 // pred_check
          %p329 = pneg %p158
        $region26: #{tpu_custom_call.1} parent=11 // pred_check_branch
          %331 = sbr.rel (%p329) target = $region28
        $region27: #{tpu_custom_call.1} parent=11 // pred_region
          _
        $region28: #{tpu_custom_call.1} parent=11 // pred_fallthru
          _
        // Predicated region
        $region29: #{tpu_custom_call.1} parent=11 // pred_check
          %p332 = pneg %p179
        $region30: #{tpu_custom_call.1} parent=11 // pred_check_branch
          %334 = sbr.rel (%p332) target = $region32
        $region31: #{tpu_custom_call.1} parent=11 // pred_region
          _
        $region32: #{tpu_custom_call.1} parent=11 // pred_fallthru
          _
        // Predicated region
        $region33: #{tpu_custom_call.1} parent=11 // pred_check
          %p335 = pneg %p200
        $region34: #{tpu_custom_call.1} parent=11 // pred_check_branch
          %337 = sbr.rel (%p335) target = $region36
        $region35: #{tpu_custom_call.1} parent=11 // pred_region
          %s339 = ssub.s32 64, 64
          %340 = vsyncadd [#allocation6], %s339
          %s341 = sshll.u32 [#allocation7], 4
          %s342 = int_to_ptr.vmem [resolvable:$true] %s341
          %347 = dma.hbm_to_vmem [thread:$0]  %s7, 64, %s342, [#allocation6], 16, 16, 1
        $region36: #{tpu_custom_call.1} parent=11 // pred_fallthru
          _
        // Predicated region
        $region37: #{tpu_custom_call.1} parent=11 // pred_check
          %p348 = pneg %p221
        $region38: #{tpu_custom_call.1} parent=11 // pred_check_branch
          %350 = sbr.rel (%p348) target = $region40
        $region39: #{tpu_custom_call.1} parent=11 // pred_region
          _
        $region40: #{tpu_custom_call.1} parent=11 // pred_fallthru
          _
        // Predicated region
        $region41: #{tpu_custom_call.1} parent=11 // pred_check
          %p351 = pneg %p242
        $region42: #{tpu_custom_call.1} parent=11 // pred_check_branch
          %353 = sbr.rel (%p351) target = $region44
        $region43: #{tpu_custom_call.1} parent=11 // pred_region
          _
        $region44: #{tpu_custom_call.1} parent=11 // pred_fallthru
          _
        // Predicated region
        $region45: #{tpu_custom_call.1} parent=11 // pred_check
          %p354 = pneg %p263
        $region46: #{tpu_custom_call.1} parent=11 // pred_check_branch
          %356 = sbr.rel (%p354) target = $region48
        $region47: #{tpu_custom_call.1} parent=11 // pred_region
          _
        $region48: #{tpu_custom_call.1} parent=11 // pred_fallthru
          _
      $region12: #{tpu_custom_call.1} parent=5 // pred_fallthru
        _
      %p357 = scmp.lt.s32.totalorder %s22, 2
      // Predicated region
      $region49: #{tpu_custom_call.1} parent=5 // pred_check
        %p358 = pneg %p357
      $region50: #{tpu_custom_call.1} parent=5 // pred_check_branch
        %360 = sbr.rel (%p358) target = $region52
      $region51: #{tpu_custom_call.1} parent=5 // pred_region
        // Predicated region
        $region53: #{tpu_custom_call.1} parent=51 // pred_check
          %p361 = pneg %p42
        $region54: #{tpu_custom_call.1} parent=51 // pred_check_branch
          %363 = sbr.rel (%p361) target = $region56
        $region55: #{tpu_custom_call.1} parent=51 // pred_region
          %s364 = smul.u32 19, %s22
          %p365 = scmp.lt.s32.totalorder %s364, 37
          %s366 = scalar_select %p365, %s364, 37
          %s367 = smul.addr %s366, 8
          %s368 = scalar_lea.vmem %s0, %s367
          %s369 = smul.u32 19, %s22
        $region56: #{tpu_custom_call.1} parent=51 // pred_fallthru
          _
        // Predicated region
        $region57: #{tpu_custom_call.1} parent=51 // pred_check
          %p370 = pneg %p68
        $region58: #{tpu_custom_call.1} parent=51 // pred_check_branch
          %372 = sbr.rel (%p370) target = $region60
        $region59: #{tpu_custom_call.1} parent=51 // pred_region
          %s373 = smul.u32 19, %s22
          %p374 = scmp.lt.s32.totalorder %s373, 37
          %s375 = scalar_select %p374, %s373, 37
          %s376 = smul.addr %s375, 8
          %s377 = scalar_lea.vmem %s1, %s376
          %s378 = smul.u32 19, %s22
        $region60: #{tpu_custom_call.1} parent=51 // pred_fallthru
          _
      $region52: #{tpu_custom_call.1} parent=5 // pred_fallthru
        _
      %p379 = scmp.le.s32.totalorder 1, %s22
      %p380 = scmp.lt.s32.totalorder %s22, 3
      %p381 = pnand %p379, %p380
      %p382 = pneg %p381
      // Predicated region
      $region61: #{tpu_custom_call.1} parent=5 // pred_check
        _
      $region62: #{tpu_custom_call.1} parent=5 // pred_check_branch
        %384 = sbr.rel (%p381) target = $region64
      $region63: #{tpu_custom_call.1} parent=5 // pred_region
        %s385 = ssub.s32 %s22, 1
        // Predicated region
        $region65: #{tpu_custom_call.1} parent=63 // pred_check
          %p386 = pneg %p95
        $region66: #{tpu_custom_call.1} parent=63 // pred_check_branch
          %388 = sbr.rel (%p386) target = $region68
        $region67: #{tpu_custom_call.1} parent=63 // pred_region
          %389 = dma.done [#allocation3], 64
        $region68: #{tpu_custom_call.1} parent=63 // pred_fallthru
          _
        // Predicated region
        $region69: #{tpu_custom_call.1} parent=63 // pred_check
          %p390 = pneg %p137
        $region70: #{tpu_custom_call.1} parent=63 // pred_check_branch
          %392 = sbr.rel (%p390) target = $region72
        $region71: #{tpu_custom_call.1} parent=63 // pred_region
          %393 = dma.done [#allocation6], 16
        $region72: #{tpu_custom_call.1} parent=63 // pred_fallthru
          _
        // Predicated region
        $region73: #{tpu_custom_call.1} parent=63 // pred_check
          %p394 = pneg %p200
        $region74: #{tpu_custom_call.1} parent=63 // pred_check_branch
          %396 = sbr.rel (%p394) target = $region76
        $region75: #{tpu_custom_call.1} parent=63 // pred_region
          %397 = dma.done [#allocation6], 64
        $region76: #{tpu_custom_call.1} parent=63 // pred_fallthru
          _
        %s398 = smul.u32 19, %s27
        %p399 = scmp.lt.s32.totalorder %s398, 37
        %s400 = scalar_select %p399, %s398, 37
        %s401 = smul.addr %s400, 8
        %s402 = scalar_lea.vmem %s0, %s401
        %p403 = pneg %p48
        %p404 = pneg %p45
        %s405 = smul.u32 19, %s27
        %p406 = scmp.lt.s32.totalorder %s405, 37
        %s407 = scalar_select %p406, %s405, 37
        %s408 = smul.addr %s407, 8
        %s409 = scalar_lea.vmem %s1, %s408
        %p410 = pneg %p74
        %p411 = pneg %p71
        %p412 = pneg %p95
        %p413 = pneg %p92
        %p414 = pneg %p116
        %p415 = pneg %p113
        %p416 = pneg %p137
        %p417 = pneg %p134
        %p418 = pneg %p158
        %p419 = pneg %p155
        %p420 = pneg %p179
        %p421 = pneg %p176
        %p422 = pneg %p200
        %p423 = pneg %p197
        %p424 = pneg %p221
        %p425 = pneg %p218
        %p426 = pneg %p242
        %p427 = pneg %p239
        %p428 = pneg %p263
        %p429 = pneg %p260
        %p430 = pneg %p289
        %p431 = pneg %p286
        %s432 = sand.u32 %s276, 1
        %s433 = scalar_lea.sflag [#allocation4], %s432
        %s434 = sand.u32 %s276, 1
        %s435 = smul.addr %s434, 152
        %s436 = scalar_lea.vmem [#allocation8], %s435
        %s437 = smul.u32 19, %s27
        %p438 = scmp.lt.s32.totalorder %s437, 37
        %s439 = scalar_select %p438, %s437, 37
        %s440 = smul.addr %s439, 8
        %s441 = scalar_lea.vmem %s0, %s440
        %s442 = smul.u32 19, %s27
        %s443 = smul.u32 19, %s27
        %p444 = scmp.lt.s32.totalorder %s443, 37
        %s445 = scalar_select %p444, %s443, 37
        %s446 = smul.addr %s445, 8
        %s447 = scalar_lea.vmem %s1, %s446
        %s448 = smul.u32 19, %s27
        %s449 = smul.u32 19, %s27
        %v450 = vld [vmem:[%s441] sm:$0xff]
        %v451 = vld [vmem:[%s441 + $0x8] sm:$0xff]
        %v452 = vld [vmem:[%s441 + $0x10] sm:$0xff]
        %v453 = vld [vmem:[%s441 + $0x18] sm:$0xff]
        %v454 = vld [vmem:[%s441 + $0x20] sm:$0xff]
        %v455 = vld [vmem:[%s441 + $0x28] sm:$0xff]
        %v456 = vld [vmem:[%s441 + $0x30] sm:$0xff]
        %v457 = vld [vmem:[%s441 + $0x38] sm:$0xff]
        %v458 = vld [vmem:[%s441 + $0x40] sm:$0xff]
        %v459 = vld [vmem:[%s441 + $0x48] sm:$0xff]
        %v460 = vld [vmem:[%s441 + $0x50] sm:$0xff]
        %v461 = vld [vmem:[%s441 + $0x58] sm:$0xff]
        %v462 = vld [vmem:[%s441 + $0x60] sm:$0xff]
        %v463 = vld [vmem:[%s441 + $0x68] sm:$0xff]
        %v464 = vld [vmem:[%s441 + $0x70] sm:$0xff]
        %v465 = vld [vmem:[%s441 + $0x78] sm:$0xff]
        %v466 = vld [vmem:[%s441 + $0x80] sm:$0xff]
        %v467 = vld [vmem:[%s441 + $0x88] sm:$0xff]
        %v468 = vld [vmem:[%s441 + $0x90] sm:$0xff]
        %v469 = vld [vmem:[%s447] sm:$0xff]
        %v470 = vld [vmem:[%s447 + $0x8] sm:$0xff]
        %v471 = vld [vmem:[%s447 + $0x10] sm:$0xff]
        %v472 = vld [vmem:[%s447 + $0x18] sm:$0xff]
        %v473 = vld [vmem:[%s447 + $0x20] sm:$0xff]
        %v474 = vld [vmem:[%s447 + $0x28] sm:$0xff]
        %v475 = vld [vmem:[%s447 + $0x30] sm:$0xff]
        %v476 = vld [vmem:[%s447 + $0x38] sm:$0xff]
        %v477 = vld [vmem:[%s447 + $0x40] sm:$0xff]
        %v478 = vld [vmem:[%s447 + $0x48] sm:$0xff]
        %v479 = vld [vmem:[%s447 + $0x50] sm:$0xff]
        %v480 = vld [vmem:[%s447 + $0x58] sm:$0xff]
        %v481 = vld [vmem:[%s447 + $0x60] sm:$0xff]
        %v482 = vld [vmem:[%s447 + $0x68] sm:$0xff]
        %v483 = vld [vmem:[%s447 + $0x70] sm:$0xff]
        %v484 = vld [vmem:[%s447 + $0x78] sm:$0xff]
        %v485 = vld [vmem:[%s447 + $0x80] sm:$0xff]
        %v486 = vld [vmem:[%s447 + $0x88] sm:$0xff]
        %v487 = vld [vmem:[%s447 + $0x90] sm:$0xff]
        %v488 = vlog2.pop %v469
        %v489 = vmul.f32 %v488, 0.6931472
        %v490 = vlog2.pop %v470
        %v491 = vmul.f32 %v490, 0.6931472
        %v492 = vlog2.pop %v471
        %v493 = vmul.f32 %v492, 0.6931472
        %v494 = vlog2.pop %v472
        %v495 = vmul.f32 %v494, 0.6931472
        %v496 = vlog2.pop %v473
        %v497 = vmul.f32 %v496, 0.6931472
        %v498 = vlog2.pop %v474
        %v499 = vmul.f32 %v498, 0.6931472
        %v500 = vlog2.pop %v475
        %v501 = vmul.f32 %v500, 0.6931472
        %v502 = vlog2.pop %v476
        %v503 = vmul.f32 %v502, 0.6931472
        %v504 = vlog2.pop %v477
        %v505 = vmul.f32 %v504, 0.6931472
        %v506 = vlog2.pop %v478
        %v507 = vmul.f32 %v506, 0.6931472
        %v508 = vlog2.pop %v479
        %v509 = vmul.f32 %v508, 0.6931472
        %v510 = vlog2.pop %v480
        %v511 = vmul.f32 %v510, 0.6931472
        %v512 = vlog2.pop %v481
        %v513 = vmul.f32 %v512, 0.6931472
        %v514 = vlog2.pop %v482
        %v515 = vmul.f32 %v514, 0.6931472
        %v516 = vlog2.pop %v483
        %v517 = vmul.f32 %v516, 0.6931472
        %v518 = vlog2.pop %v484
        %v519 = vmul.f32 %v518, 0.6931472
        %v520 = vlog2.pop %v485
        %v521 = vmul.f32 %v520, 0.6931472
        %v522 = vlog2.pop %v486
        %v523 = vmul.f32 %v522, 0.6931472
        %v524 = vlog2.pop %v487
        %v525 = vmul.f32 %v524, 0.6931472
        %527 = vset.pattern.permute.xlu0 0
        %528 = vperm.xlu0 %527, %v489
        %v529 = vpop.permute.xlu0 %528
        %532 = vset.pattern.permute.xlu0 0
        %533 = vperm.xlu0 %532, %v491
        %v534 = vpop.permute.xlu0 %533
        %537 = vset.pattern.permute.xlu0 0
        %538 = vperm.xlu0 %537, %v493
        %v539 = vpop.permute.xlu0 %538
        %542 = vset.pattern.permute.xlu0 0
        %543 = vperm.xlu0 %542, %v495
        %v544 = vpop.permute.xlu0 %543
        %547 = vset.pattern.permute.xlu0 0
        %548 = vperm.xlu0 %547, %v497
        %v549 = vpop.permute.xlu0 %548
        %552 = vset.pattern.permute.xlu0 0
        %553 = vperm.xlu0 %552, %v499
        %v554 = vpop.permute.xlu0 %553
        %557 = vset.pattern.permute.xlu0 0
        %558 = vperm.xlu0 %557, %v501
        %v559 = vpop.permute.xlu0 %558
        %562 = vset.pattern.permute.xlu0 0
        %563 = vperm.xlu0 %562, %v503
        %v564 = vpop.permute.xlu0 %563
        %567 = vset.pattern.permute.xlu0 0
        %568 = vperm.xlu0 %567, %v505
        %v569 = vpop.permute.xlu0 %568
        %572 = vset.pattern.permute.xlu0 0
        %573 = vperm.xlu0 %572, %v507
        %v574 = vpop.permute.xlu0 %573
        %577 = vset.pattern.permute.xlu0 0
        %578 = vperm.xlu0 %577, %v509
        %v579 = vpop.permute.xlu0 %578
        %582 = vset.pattern.permute.xlu0 0
        %583 = vperm.xlu0 %582, %v511
        %v584 = vpop.permute.xlu0 %583
        %587 = vset.pattern.permute.xlu0 0
        %588 = vperm.xlu0 %587, %v513
        %v589 = vpop.permute.xlu0 %588
        %592 = vset.pattern.permute.xlu0 0
        %593 = vperm.xlu0 %592, %v515
        %v594 = vpop.permute.xlu0 %593
        %597 = vset.pattern.permute.xlu0 0
        %598 = vperm.xlu0 %597, %v517
        %v599 = vpop.permute.xlu0 %598
        %602 = vset.pattern.permute.xlu0 0
        %603 = vperm.xlu0 %602, %v519
        %v604 = vpop.permute.xlu0 %603
        %607 = vset.pattern.permute.xlu0 0
        %608 = vperm.xlu0 %607, %v521
        %v609 = vpop.permute.xlu0 %608
        %612 = vset.pattern.permute.xlu0 0
        %613 = vperm.xlu0 %612, %v523
        %v614 = vpop.permute.xlu0 %613
        %617 = vset.pattern.permute.xlu0 0
        %618 = vperm.xlu0 %617, %v525
        %v619 = vpop.permute.xlu0 %618
        %v621 = vld [vmem:[#allocation2] sm:$0xf]
        %v622 = vld [vmem:[%s3] sm:$0x1]
        %v624 = vlaneseq
        %v625 = vshrl.u32 %v624, 7
        %v626 = vsub.s32 0, %v625
        %v627 = vrot.slane %v622, %v626
        %v629 = vmul.f32 %v529, %v627
        %v630 = vmul.f32 %v534, %v627
        %v631 = vmul.f32 %v539, %v627
        %v632 = vmul.f32 %v544, %v627
        %v633 = vmul.f32 %v549, %v627
        %v634 = vmul.f32 %v554, %v627
        %v635 = vmul.f32 %v559, %v627
        %v636 = vmul.f32 %v564, %v627
        %v637 = vmul.f32 %v569, %v627
        %v638 = vmul.f32 %v574, %v627
        %v639 = vmul.f32 %v579, %v627
        %v640 = vmul.f32 %v584, %v627
        %v641 = vmul.f32 %v589, %v627
        %v642 = vmul.f32 %v594, %v627
        %v643 = vmul.f32 %v599, %v627
        %v644 = vmul.f32 %v604, %v627
        %v645 = vmul.f32 %v609, %v627
        %v646 = vmul.f32 %v614, %v627
        %v647 = vmul.f32 %v619, %v627
        %v648 = vld [vmem:[#allocation5] sm:$0x1]
        %v650 = vlaneseq
        %v651 = vshrl.u32 %v650, 7
        %v652 = vsub.s32 0, %v651
        %v653 = vrot.slane %v648, %v652
        %v655 = vadd.f32 %v629, %v653
        %v656 = vadd.f32 %v630, %v653
        %v657 = vadd.f32 %v631, %v653
        %v658 = vadd.f32 %v632, %v653
        %v659 = vadd.f32 %v633, %v653
        %v660 = vadd.f32 %v634, %v653
        %v661 = vadd.f32 %v635, %v653
        %v662 = vadd.f32 %v636, %v653
        %v663 = vadd.f32 %v637, %v653
        %v664 = vadd.f32 %v638, %v653
        %v665 = vadd.f32 %v639, %v653
        %v666 = vadd.f32 %v640, %v653
        %v667 = vadd.f32 %v641, %v653
        %v668 = vadd.f32 %v642, %v653
        %v669 = vadd.f32 %v643, %v653
        %v670 = vadd.f32 %v644, %v653
        %v671 = vadd.f32 %v645, %v653
        %v672 = vadd.f32 %v646, %v653
        %v673 = vadd.f32 %v647, %v653
        %vm674 = vcmask 31744
        %v676 = vsel %vm674, %v450, 0
        %v679 = vsel %vm674, %v451, 0
        %v682 = vsel %vm674, %v452, 0
        %v685 = vsel %vm674, %v453, 0
        %v688 = vsel %vm674, %v454, 0
        %v691 = vsel %vm674, %v455, 0
        %v694 = vsel %vm674, %v456, 0
        %v697 = vsel %vm674, %v457, 0
        %v700 = vsel %vm674, %v458, 0
        %v703 = vsel %vm674, %v459, 0
        %v706 = vsel %vm674, %v460, 0
        %v709 = vsel %vm674, %v461, 0
        %v712 = vsel %vm674, %v462, 0
        %v715 = vsel %vm674, %v463, 0
        %v718 = vsel %vm674, %v464, 0
        %v721 = vsel %vm674, %v465, 0
        %v724 = vsel %vm674, %v466, 0
        %v727 = vsel %vm674, %v467, 0
        %v730 = vsel %vm674, %v468, 0
        %vm732 = vcmask 1043456
        %v734 = vsel %vm732, %v621, 0
        %736 = vmatprep.subr.mxu0 0.0
        %737 = vmatpush1.msra.mxu0 %v734
        %738 = vmatprep.subr.mxu0 0.0
        %739 = vmatpush1.msra.mxu0 0.0
        %740 = vmatprep.subr.mxu0 0.0
        %741 = vmatpush1.msra.mxu0 0.0
        %742 = vmatprep.subr.mxu0 0.0
        %743 = vmatpush1.msra.mxu0 0.0
        %744 = vmatprep.subr.mxu0 0.0
        %745 = vmatpush1.msra.mxu0 0.0
        %746 = vmatprep.subr.mxu0 0.0
        %747 = vmatpush1.msra.mxu0 0.0
        %748 = vmatprep.subr.mxu0 0.0
        %749 = vmatpush1.msra.mxu0 0.0
        %750 = vmatprep.subr.mxu0 0.0
        %751 = vmatpush1.msra.mxu0 0.0
        %752 = vmatprep.subr.mxu0 0.0
        %753 = vmatpush1.msra.mxu0 0.0
        %754 = vmatprep.subr.mxu0 0.0
        %755 = vmatpush1.msra.mxu0 0.0
        %756 = vmatprep.subr.mxu0 0.0
        %757 = vmatpush1.msra.mxu0 0.0
        %758 = vmatprep.subr.mxu0 0.0
        %759 = vmatpush1.msra.mxu0 0.0
        %760 = vmatprep.subr.mxu0 0.0
        %761 = vmatpush1.msra.mxu0 0.0
        %762 = vmatprep.subr.mxu0 0.0
        %763 = vmatpush1.msra.mxu0 0.0
        %764 = vmatprep.subr.mxu0 0.0
        %765 = vmatpush1.msra.mxu0 0.0
        %766 = vmatprep.subr.mxu0 0.0
        %767 = vmatpush1.msra.mxu0 0.0
        %768 = vmatprep.subr.mxu0 0.0
        %769 = vmatpush1.msra.mxu0 0.0
        %770 = vmatprep.subr.mxu0 0.0
        %771 = vmatpush1.msra.mxu0 0.0
        %772 = vmatprep.subr.mxu0 0.0
        %773 = vmatpush1.msra.mxu0 0.0
        %774 = vmatprep.subr.mxu0 0.0
        %775 = vmatpush1.msra.mxu0 0.0
        %776 = vmatprep.subr.mxu0 0.0
        %777 = vmatpush1.msra.mxu0 0.0
        %778 = vmatprep.subr.mxu0 0.0
        %779 = vmatpush1.msra.mxu0 0.0
        %780 = vmatprep.subr.mxu0 0.0
        %781 = vmatpush1.msra.mxu0 0.0
        %782 = vmatprep.subr.mxu0 0.0
        %783 = vmatpush1.msra.mxu0 0.0
        %784 = vmatprep.subr.mxu0 0.0
        %785 = vmatpush1.msra.mxu0 0.0
        %786 = vmatprep.subr.mxu0 0.0
        %787 = vmatpush1.msra.mxu0 0.0
        %788 = vmatprep.subr.mxu0 0.0
        %789 = vmatpush1.msra.mxu0 0.0
        %790 = vmatprep.subr.mxu0 0.0
        %791 = vmatpush1.msra.mxu0 0.0
        %792 = vmatprep.subr.mxu0 0.0
        %793 = vmatpush1.msra.mxu0 0.0
        %794 = vmatprep.subr.mxu0 0.0
        %795 = vmatpush1.msra.mxu0 0.0
        %796 = vmatprep.subr.mxu0 0.0
        %797 = vmatpush1.msra.mxu0 0.0
        %798 = vmatprep.subr.mxu0 0.0
        %799 = vmatpush1.msra.mxu0 0.0
        %800 = vmatprep.mubr.f32.mxu0 0.0
        %801 = vmatmul.mubr.f32.gmra.mrb[0].mxu0 %v676
        %v802 = vpop.f32.mrb[0].mxu0
        %v803 = vadd.f32 %v655, %v802
        %v804 = vpop.f32.mrb[0].mxu0
        %805 = vmatprep.mubr.f32.mxu0 0.0
        %806 = vmatmul.mubr.f32.gmra.mrb[0].mxu0 %v679
        %v807 = vpop.f32.mrb[0].mxu0
        %v808 = vadd.f32 %v656, %v807
        %v809 = vpop.f32.mrb[0].mxu0
        %810 = vmatprep.mubr.f32.mxu0 0.0
        %811 = vmatmul.mubr.f32.gmra.mrb[0].mxu0 %v682
        %v812 = vpop.f32.mrb[0].mxu0
        %v813 = vadd.f32 %v657, %v812
        %v814 = vpop.f32.mrb[0].mxu0
        %815 = vmatprep.mubr.f32.mxu0 0.0
        %816 = vmatmul.mubr.f32.gmra.mrb[0].mxu0 %v685
        %v817 = vpop.f32.mrb[0].mxu0
        %v818 = vadd.f32 %v658, %v817
        %v819 = vpop.f32.mrb[0].mxu0
        %820 = vmatprep.mubr.f32.mxu0 0.0
        %821 = vmatmul.mubr.f32.gmra.mrb[0].mxu0 %v688
        %v822 = vpop.f32.mrb[0].mxu0
        %v823 = vadd.f32 %v659, %v822
        %v824 = vpop.f32.mrb[0].mxu0
        %825 = vmatprep.mubr.f32.mxu0 0.0
        %826 = vmatmul.mubr.f32.gmra.mrb[0].mxu0 %v691
        %v827 = vpop.f32.mrb[0].mxu0
        %v828 = vadd.f32 %v660, %v827
        %v829 = vpop.f32.mrb[0].mxu0
        %830 = vmatprep.mubr.f32.mxu0 0.0
        %831 = vmatmul.mubr.f32.gmra.mrb[0].mxu0 %v694
        %v832 = vpop.f32.mrb[0].mxu0
        %v833 = vadd.f32 %v661, %v832
        %v834 = vpop.f32.mrb[0].mxu0
        %835 = vmatprep.mubr.f32.mxu0 0.0
        %836 = vmatmul.mubr.f32.gmra.mrb[0].mxu0 %v697
        %v837 = vpop.f32.mrb[0].mxu0
        %v838 = vadd.f32 %v662, %v837
        %v839 = vpop.f32.mrb[0].mxu0
        %840 = vmatprep.mubr.f32.mxu0 0.0
        %841 = vmatmul.mubr.f32.gmra.mrb[0].mxu0 %v700
        %v842 = vpop.f32.mrb[0].mxu0
        %v843 = vadd.f32 %v663, %v842
        %v844 = vpop.f32.mrb[0].mxu0
        %845 = vmatprep.mubr.f32.mxu0 0.0
        %846 = vmatmul.mubr.f32.gmra.mrb[0].mxu0 %v703
        %v847 = vpop.f32.mrb[0].mxu0
        %v848 = vadd.f32 %v664, %v847
        %v849 = vpop.f32.mrb[0].mxu0
        %850 = vmatprep.mubr.f32.mxu0 0.0
        %851 = vmatmul.mubr.f32.gmra.mrb[0].mxu0 %v706
        %v852 = vpop.f32.mrb[0].mxu0
        %v853 = vadd.f32 %v665, %v852
        %v854 = vpop.f32.mrb[0].mxu0
        %855 = vmatprep.mubr.f32.mxu0 0.0
        %856 = vmatmul.mubr.f32.gmra.mrb[0].mxu0 %v709
        %v857 = vpop.f32.mrb[0].mxu0
        %v858 = vadd.f32 %v666, %v857
        %v859 = vpop.f32.mrb[0].mxu0
        %860 = vmatprep.mubr.f32.mxu0 0.0
        %861 = vmatmul.mubr.f32.gmra.mrb[0].mxu0 %v712
        %v862 = vpop.f32.mrb[0].mxu0
        %v863 = vadd.f32 %v667, %v862
        %v864 = vpop.f32.mrb[0].mxu0
        %865 = vmatprep.mubr.f32.mxu0 0.0
        %866 = vmatmul.mubr.f32.gmra.mrb[0].mxu0 %v715
        %v867 = vpop.f32.mrb[0].mxu0
        %v868 = vadd.f32 %v668, %v867
        %v869 = vpop.f32.mrb[0].mxu0
        %870 = vmatprep.mubr.f32.mxu0 0.0
        %871 = vmatmul.mubr.f32.gmra.mrb[0].mxu0 %v718
        %v872 = vpop.f32.mrb[0].mxu0
        %v873 = vadd.f32 %v669, %v872
        %v874 = vpop.f32.mrb[0].mxu0
        %875 = vmatprep.mubr.f32.mxu0 0.0
        %876 = vmatmul.mubr.f32.gmra.mrb[0].mxu0 %v721
        %v877 = vpop.f32.mrb[0].mxu0
        %v878 = vadd.f32 %v670, %v877
        %v879 = vpop.f32.mrb[0].mxu0
        %880 = vmatprep.mubr.f32.mxu0 0.0
        %881 = vmatmul.mubr.f32.gmra.mrb[0].mxu0 %v724
        %v882 = vpop.f32.mrb[0].mxu0
        %v883 = vadd.f32 %v671, %v882
        %v884 = vpop.f32.mrb[0].mxu0
        %885 = vmatprep.mubr.f32.mxu0 0.0
        %886 = vmatmul.mubr.f32.gmra.mrb[0].mxu0 %v727
        %v887 = vpop.f32.mrb[0].mxu0
        %v888 = vadd.f32 %v672, %v887
        %v889 = vpop.f32.mrb[0].mxu0
        %890 = vmatprep.mubr.f32.mxu0 0.0
        %891 = vmatmul.mubr.f32.gmra.mrb[0].mxu0 %v730
        %v892 = vpop.f32.mrb[0].mxu0
        %v893 = vadd.f32 %v673, %v892
        %v894 = vpop.f32.mrb[0].mxu0
        %895 = vdwg.mxu0
        %v896 = vsub.f32 0.0, %v803
        %v897 = vsub.f32 0.0, %v808
        %v898 = vsub.f32 0.0, %v813
        %v899 = vsub.f32 0.0, %v818
        %v900 = vsub.f32 0.0, %v823
        %v901 = vsub.f32 0.0, %v828
        %v902 = vsub.f32 0.0, %v833
        %v903 = vsub.f32 0.0, %v838
        %v904 = vsub.f32 0.0, %v843
        %v905 = vsub.f32 0.0, %v848
        %v906 = vsub.f32 0.0, %v853
        %v907 = vsub.f32 0.0, %v858
        %v908 = vsub.f32 0.0, %v863
        %v909 = vsub.f32 0.0, %v868
        %v910 = vsub.f32 0.0, %v873
        %v911 = vsub.f32 0.0, %v878
        %v912 = vsub.f32 0.0, %v883
        %v913 = vsub.f32 0.0, %v888
        %v914 = vsub.f32 0.0, %v893
        %v915 = vmul.f32 %v896, 1.442695
        %v916 = vpow.pop %v915
        %v917 = vmul.f32 %v897, 1.442695
        %v918 = vpow.pop %v917
        %v919 = vmul.f32 %v898, 1.442695
        %v920 = vpow.pop %v919
        %v921 = vmul.f32 %v899, 1.442695
        %v922 = vpow.pop %v921
        %v923 = vmul.f32 %v900, 1.442695
        %v924 = vpow.pop %v923
        %v925 = vmul.f32 %v901, 1.442695
        %v926 = vpow.pop %v925
        %v927 = vmul.f32 %v902, 1.442695
        %v928 = vpow.pop %v927
        %v929 = vmul.f32 %v903, 1.442695
        %v930 = vpow.pop %v929
        %v931 = vmul.f32 %v904, 1.442695
        %v932 = vpow.pop %v931
        %v933 = vmul.f32 %v905, 1.442695
        %v934 = vpow.pop %v933
        %v935 = vmul.f32 %v906, 1.442695
        %v936 = vpow.pop %v935
        %v937 = vmul.f32 %v907, 1.442695
        %v938 = vpow.pop %v937
        %v939 = vmul.f32 %v908, 1.442695
        %v940 = vpow.pop %v939
        %v941 = vmul.f32 %v909, 1.442695
        %v942 = vpow.pop %v941
        %v943 = vmul.f32 %v910, 1.442695
        %v944 = vpow.pop %v943
        %v945 = vmul.f32 %v911, 1.442695
        %v946 = vpow.pop %v945
        %v947 = vmul.f32 %v912, 1.442695
        %v948 = vpow.pop %v947
        %v949 = vmul.f32 %v913, 1.442695
        %v950 = vpow.pop %v949
        %v951 = vmul.f32 %v914, 1.442695
        %v952 = vpow.pop %v951
        %v953 = vadd.f32 %v916, 1.0
        %v954 = vadd.f32 %v918, 1.0
        %v955 = vadd.f32 %v920, 1.0
        %v956 = vadd.f32 %v922, 1.0
        %v957 = vadd.f32 %v924, 1.0
        %v958 = vadd.f32 %v926, 1.0
        %v959 = vadd.f32 %v928, 1.0
        %v960 = vadd.f32 %v930, 1.0
        %v961 = vadd.f32 %v932, 1.0
        %v962 = vadd.f32 %v934, 1.0
        %v963 = vadd.f32 %v936, 1.0
        %v964 = vadd.f32 %v938, 1.0
        %v965 = vadd.f32 %v940, 1.0
        %v966 = vadd.f32 %v942, 1.0
        %v967 = vadd.f32 %v944, 1.0
        %v968 = vadd.f32 %v946, 1.0
        %v969 = vadd.f32 %v948, 1.0
        %v970 = vadd.f32 %v950, 1.0
        %v971 = vadd.f32 %v952, 1.0
        %v972 = vrcp.pop %v953
        %v973 = vrcp.pop %v954
        %v974 = vrcp.pop %v955
        %v975 = vrcp.pop %v956
        %v976 = vrcp.pop %v957
        %v977 = vrcp.pop %v958
        %v978 = vrcp.pop %v959
        %v979 = vrcp.pop %v960
        %v980 = vrcp.pop %v961
        %v981 = vrcp.pop %v962
        %v982 = vrcp.pop %v963
        %v983 = vrcp.pop %v964
        %v984 = vrcp.pop %v965
        %v985 = vrcp.pop %v966
        %v986 = vrcp.pop %v967
        %v987 = vrcp.pop %v968
        %v988 = vrcp.pop %v969
        %v989 = vrcp.pop %v970
        %v990 = vrcp.pop %v971
        %v991 = vmul.f32 %v803, %v972
        %v992 = vmul.f32 %v808, %v973
        %v993 = vmul.f32 %v813, %v974
        %v994 = vmul.f32 %v818, %v975
        %v995 = vmul.f32 %v823, %v976
        %v996 = vmul.f32 %v828, %v977
        %v997 = vmul.f32 %v833, %v978
        %v998 = vmul.f32 %v838, %v979
        %v999 = vmul.f32 %v843, %v980
        %v1000 = vmul.f32 %v848, %v981
        %v1001 = vmul.f32 %v853, %v982
        %v1002 = vmul.f32 %v858, %v983
        %v1003 = vmul.f32 %v863, %v984
        %v1004 = vmul.f32 %v868, %v985
        %v1005 = vmul.f32 %v873, %v986
        %v1006 = vmul.f32 %v878, %v987
        %v1007 = vmul.f32 %v883, %v988
        %v1008 = vmul.f32 %v888, %v989
        %v1009 = vmul.f32 %v893, %v990
        %v1010 = vld [vmem:[%s6] sm:$0x1]
        %v1012 = vlaneseq
        %v1013 = vshrl.u32 %v1012, 7
        %v1014 = vsub.s32 0, %v1013
        %v1015 = vrot.slane %v1010, %v1014
        %v1017 = vmul.f32 %v529, %v1015
        %v1018 = vmul.f32 %v534, %v1015
        %v1019 = vmul.f32 %v539, %v1015
        %v1020 = vmul.f32 %v544, %v1015
        %v1021 = vmul.f32 %v549, %v1015
        %v1022 = vmul.f32 %v554, %v1015
        %v1023 = vmul.f32 %v559, %v1015
        %v1024 = vmul.f32 %v564, %v1015
        %v1025 = vmul.f32 %v569, %v1015
        %v1026 = vmul.f32 %v574, %v1015
        %v1027 = vmul.f32 %v579, %v1015
        %v1028 = vmul.f32 %v584, %v1015
        %v1029 = vmul.f32 %v589, %v1015
        %v1030 = vmul.f32 %v594, %v1015
        %v1031 = vmul.f32 %v599, %v1015
        %v1032 = vmul.f32 %v604, %v1015
        %v1033 = vmul.f32 %v609, %v1015
        %v1034 = vmul.f32 %v614, %v1015
        %v1035 = vmul.f32 %v619, %v1015
        %v1036 = vld [vmem:[#allocation7] sm:$0x1]
        %v1038 = vlaneseq
        %v1039 = vshrl.u32 %v1038, 7
        %v1040 = vsub.s32 0, %v1039
        %v1041 = vrot.slane %v1036, %v1040
        %v1043 = vadd.f32 %v1017, %v1041
        %v1044 = vadd.f32 %v1018, %v1041
        %v1045 = vadd.f32 %v1019, %v1041
        %v1046 = vadd.f32 %v1020, %v1041
        %v1047 = vadd.f32 %v1021, %v1041
        %v1048 = vadd.f32 %v1022, %v1041
        %v1049 = vadd.f32 %v1023, %v1041
        %v1050 = vadd.f32 %v1024, %v1041
        %v1051 = vadd.f32 %v1025, %v1041
        %v1052 = vadd.f32 %v1026, %v1041
        %v1053 = vadd.f32 %v1027, %v1041
        %v1054 = vadd.f32 %v1028, %v1041
        %v1055 = vadd.f32 %v1029, %v1041
        %v1056 = vadd.f32 %v1030, %v1041
        %v1057 = vadd.f32 %v1031, %v1041
        %v1058 = vadd.f32 %v1032, %v1041
        %v1059 = vadd.f32 %v1033, %v1041
        %v1060 = vadd.f32 %v1034, %v1041
        %v1061 = vadd.f32 %v1035, %v1041
        %v1062 = vld [vmem:[%s5] sm:$0xff]
        %v1063 = vld [vmem:[%s5 + $0x8] sm:$0xff]
        %v1064 = vld [vmem:[%s5 + $0x10] sm:$0xff]
        %v1065 = vld [vmem:[%s5 + $0x18] sm:$0xff]
        %v1066 = vld [vmem:[%s5 + $0x20] sm:$0xff]
        %v1067 = vld [vmem:[%s5 + $0x28] sm:$0xff]
        %v1068 = vld [vmem:[%s5 + $0x30] sm:$0xff]
        %v1069 = vld [vmem:[%s5 + $0x38] sm:$0xff]
        %v1070 = vld [vmem:[%s5 + $0x40] sm:$0xff]
        %v1071 = vld [vmem:[%s5 + $0x48] sm:$0xff]
        %v1072 = vld [vmem:[%s5 + $0x50] sm:$0xff]
        %v1073 = vld [vmem:[%s5 + $0x58] sm:$0xff]
        %v1074 = vld [vmem:[%s5 + $0x60] sm:$0xff]
        %v1075 = vld [vmem:[%s5 + $0x68] sm:$0xff]
        %v1076 = vld [vmem:[%s5 + $0x70] sm:$0xff]
        %v1077 = vld [vmem:[%s5 + $0x78] sm:$0xff]
        %1078 = vmatprep.subr.mxu0 0.0
        %1079 = vmatpush1.msra.mxu0 %v1062
        %1080 = vmatprep.subr.mxu0 0.0
        %1081 = vmatpush1.msra.mxu0 %v1063
        %1082 = vmatprep.subr.mxu0 0.0
        %1083 = vmatpush1.msra.mxu0 %v1064
        %1084 = vmatprep.subr.mxu0 0.0
        %1085 = vmatpush1.msra.mxu0 %v1065
        %1086 = vmatprep.subr.mxu0 0.0
        %1087 = vmatpush1.msra.mxu0 %v1066
        %1088 = vmatprep.subr.mxu0 0.0
        %1089 = vmatpush1.msra.mxu0 %v1067
        %1090 = vmatprep.subr.mxu0 0.0
        %1091 = vmatpush1.msra.mxu0 %v1068
        %1092 = vmatprep.subr.mxu0 0.0
        %1093 = vmatpush1.msra.mxu0 %v1069
        %1094 = vmatprep.subr.mxu0 0.0
        %1095 = vmatpush1.msra.mxu0 %v1070
        %1096 = vmatprep.subr.mxu0 0.0
        %1097 = vmatpush1.msra.mxu0 %v1071
        %1098 = vmatprep.subr.mxu0 0.0
        %1099 = vmatpush1.msra.mxu0 %v1072
        %1100 = vmatprep.subr.mxu0 0.0
        %1101 = vmatpush1.msra.mxu0 %v1073
        %1102 = vmatprep.subr.mxu0 0.0
        %1103 = vmatpush1.msra.mxu0 %v1074
        %1104 = vmatprep.subr.mxu0 0.0
        %1105 = vmatpush1.msra.mxu0 %v1075
        %1106 = vmatprep.subr.mxu0 0.0
        %1107 = vmatpush1.msra.mxu0 %v1076
        %1108 = vmatprep.subr.mxu0 0.0
        %1109 = vmatpush1.msra.mxu0 %v1077
        %1110 = vmatprep.subr.mxu0 0.0
        %1111 = vmatpush1.msra.mxu0 0.0
        %1112 = vmatprep.subr.mxu0 0.0
        %1113 = vmatpush1.msra.mxu0 0.0
        %1114 = vmatprep.subr.mxu0 0.0
        %1115 = vmatpush1.msra.mxu0 0.0
        %1116 = vmatprep.subr.mxu0 0.0
        %1117 = vmatpush1.msra.mxu0 0.0
        %1118 = vmatprep.subr.mxu0 0.0
        %1119 = vmatpush1.msra.mxu0 0.0
        %1120 = vmatprep.subr.mxu0 0.0
        %1121 = vmatpush1.msra.mxu0 0.0
        %1122 = vmatprep.subr.mxu0 0.0
        %1123 = vmatpush1.msra.mxu0 0.0
        %1124 = vmatprep.subr.mxu0 0.0
        %1125 = vmatpush1.msra.mxu0 0.0
        %1126 = vmatprep.subr.mxu0 0.0
        %1127 = vmatpush1.msra.mxu0 0.0
        %1128 = vmatprep.subr.mxu0 0.0
        %1129 = vmatpush1.msra.mxu0 0.0
        %1130 = vmatprep.subr.mxu0 0.0
        %1131 = vmatpush1.msra.mxu0 0.0
        %1132 = vmatprep.subr.mxu0 0.0
        %1133 = vmatpush1.msra.mxu0 0.0
        %1134 = vmatprep.subr.mxu0 0.0
        %1135 = vmatpush1.msra.mxu0 0.0
        %1136 = vmatprep.subr.mxu0 0.0
        %1137 = vmatpush1.msra.mxu0 0.0
        %1138 = vmatprep.subr.mxu0 0.0
        %1139 = vmatpush1.msra.mxu0 0.0
        %1140 = vmatprep.subr.mxu0 0.0
        %1141 = vmatpush1.msra.mxu0 0.0
        %1142 = vmatprep.mubr.f32.mxu0 0.0
        %1143 = vmatmul.mubr.f32.gmra.mrb[0].mxu0 %v991
        %v1144 = vpop.f32.mrb[0].mxu0
        %v1145 = vadd.f32 %v1043, %v1144
        %v1146 = vpop.f32.mrb[0].mxu0
        %1147 = vmatprep.mubr.f32.mxu0 0.0
        %1148 = vmatmul.mubr.f32.gmra.mrb[0].mxu0 %v992
        %v1149 = vpop.f32.mrb[0].mxu0
        %v1150 = vadd.f32 %v1044, %v1149
        %v1151 = vpop.f32.mrb[0].mxu0
        %1152 = vmatprep.mubr.f32.mxu0 0.0
        %1153 = vmatmul.mubr.f32.gmra.mrb[0].mxu0 %v993
        %v1154 = vpop.f32.mrb[0].mxu0
        %v1155 = vadd.f32 %v1045, %v1154
        %v1156 = vpop.f32.mrb[0].mxu0
        %1157 = vmatprep.mubr.f32.mxu0 0.0
        %1158 = vmatmul.mubr.f32.gmra.mrb[0].mxu0 %v994
        %v1159 = vpop.f32.mrb[0].mxu0
        %v1160 = vadd.f32 %v1046, %v1159
        %v1161 = vpop.f32.mrb[0].mxu0
        %1162 = vmatprep.mubr.f32.mxu0 0.0
        %1163 = vmatmul.mubr.f32.gmra.mrb[0].mxu0 %v995
        %v1164 = vpop.f32.mrb[0].mxu0
        %v1165 = vadd.f32 %v1047, %v1164
        %v1166 = vpop.f32.mrb[0].mxu0
        %1167 = vmatprep.mubr.f32.mxu0 0.0
        %1168 = vmatmul.mubr.f32.gmra.mrb[0].mxu0 %v996
        %v1169 = vpop.f32.mrb[0].mxu0
        %v1170 = vadd.f32 %v1048, %v1169
        %v1171 = vpop.f32.mrb[0].mxu0
        %1172 = vmatprep.mubr.f32.mxu0 0.0
        %1173 = vmatmul.mubr.f32.gmra.mrb[0].mxu0 %v997
        %v1174 = vpop.f32.mrb[0].mxu0
        %v1175 = vadd.f32 %v1049, %v1174
        %v1176 = vpop.f32.mrb[0].mxu0
        %1177 = vmatprep.mubr.f32.mxu0 0.0
        %1178 = vmatmul.mubr.f32.gmra.mrb[0].mxu0 %v998
        %v1179 = vpop.f32.mrb[0].mxu0
        %v1180 = vadd.f32 %v1050, %v1179
        %v1181 = vpop.f32.mrb[0].mxu0
        %1182 = vmatprep.mubr.f32.mxu0 0.0
        %1183 = vmatmul.mubr.f32.gmra.mrb[0].mxu0 %v999
        %v1184 = vpop.f32.mrb[0].mxu0
        %v1185 = vadd.f32 %v1051, %v1184
        %v1186 = vpop.f32.mrb[0].mxu0
        %1187 = vmatprep.mubr.f32.mxu0 0.0
        %1188 = vmatmul.mubr.f32.gmra.mrb[0].mxu0 %v1000
        %v1189 = vpop.f32.mrb[0].mxu0
        %v1190 = vadd.f32 %v1052, %v1189
        %v1191 = vpop.f32.mrb[0].mxu0
        %1192 = vmatprep.mubr.f32.mxu0 0.0
        %1193 = vmatmul.mubr.f32.gmra.mrb[0].mxu0 %v1001
        %v1194 = vpop.f32.mrb[0].mxu0
        %v1195 = vadd.f32 %v1053, %v1194
        %v1196 = vpop.f32.mrb[0].mxu0
        %1197 = vmatprep.mubr.f32.mxu0 0.0
        %1198 = vmatmul.mubr.f32.gmra.mrb[0].mxu0 %v1002
        %v1199 = vpop.f32.mrb[0].mxu0
        %v1200 = vadd.f32 %v1054, %v1199
        %v1201 = vpop.f32.mrb[0].mxu0
        %1202 = vmatprep.mubr.f32.mxu0 0.0
        %1203 = vmatmul.mubr.f32.gmra.mrb[0].mxu0 %v1003
        %v1204 = vpop.f32.mrb[0].mxu0
        %v1205 = vadd.f32 %v1055, %v1204
        %v1206 = vpop.f32.mrb[0].mxu0
        %1207 = vmatprep.mubr.f32.mxu0 0.0
        %1208 = vmatmul.mubr.f32.gmra.mrb[0].mxu0 %v1004
        %v1209 = vpop.f32.mrb[0].mxu0
        %v1210 = vadd.f32 %v1056, %v1209
        %v1211 = vpop.f32.mrb[0].mxu0
        %1212 = vmatprep.mubr.f32.mxu0 0.0
        %1213 = vmatmul.mubr.f32.gmra.mrb[0].mxu0 %v1005
        %v1214 = vpop.f32.mrb[0].mxu0
        %v1215 = vadd.f32 %v1057, %v1214
        %v1216 = vpop.f32.mrb[0].mxu0
        %1217 = vmatprep.mubr.f32.mxu0 0.0
        %1218 = vmatmul.mubr.f32.gmra.mrb[0].mxu0 %v1006
        %v1219 = vpop.f32.mrb[0].mxu0
        %v1220 = vadd.f32 %v1058, %v1219
        %v1221 = vpop.f32.mrb[0].mxu0
        %1222 = vmatprep.mubr.f32.mxu0 0.0
        %1223 = vmatmul.mubr.f32.gmra.mrb[0].mxu0 %v1007
        %v1224 = vpop.f32.mrb[0].mxu0
        %v1225 = vadd.f32 %v1059, %v1224
        %v1226 = vpop.f32.mrb[0].mxu0
        %1227 = vmatprep.mubr.f32.mxu0 0.0
        %1228 = vmatmul.mubr.f32.gmra.mrb[0].mxu0 %v1008
        %v1229 = vpop.f32.mrb[0].mxu0
        %v1230 = vadd.f32 %v1060, %v1229
        %v1231 = vpop.f32.mrb[0].mxu0
        %1232 = vmatprep.mubr.f32.mxu0 0.0
        %1233 = vmatmul.mubr.f32.gmra.mrb[0].mxu0 %v1009
        %v1234 = vpop.f32.mrb[0].mxu0
        %v1235 = vadd.f32 %v1061, %v1234
        %v1236 = vpop.f32.mrb[0].mxu0
        %1237 = vdwg.mxu0
        %v1238 = vadd.f32 %v991, %v1145
        %v1239 = vadd.f32 %v992, %v1150
        %v1240 = vadd.f32 %v993, %v1155
        %v1241 = vadd.f32 %v994, %v1160
        %v1242 = vadd.f32 %v995, %v1165
        %v1243 = vadd.f32 %v996, %v1170
        %v1244 = vadd.f32 %v997, %v1175
        %v1245 = vadd.f32 %v998, %v1180
        %v1246 = vadd.f32 %v999, %v1185
        %v1247 = vadd.f32 %v1000, %v1190
        %v1248 = vadd.f32 %v1001, %v1195
        %v1249 = vadd.f32 %v1002, %v1200
        %v1250 = vadd.f32 %v1003, %v1205
        %v1251 = vadd.f32 %v1004, %v1210
        %v1252 = vadd.f32 %v1005, %v1215
        %v1253 = vadd.f32 %v1006, %v1220
        %v1254 = vadd.f32 %v1007, %v1225
        %v1255 = vadd.f32 %v1008, %v1230
        %v1256 = vadd.f32 %v1009, %v1235
        %v1257 = vsub.f32 0.0, %v1238
        %v1258 = vsub.f32 0.0, %v1239
        %v1259 = vsub.f32 0.0, %v1240
        %v1260 = vsub.f32 0.0, %v1241
        %v1261 = vsub.f32 0.0, %v1242
        %v1262 = vsub.f32 0.0, %v1243
        %v1263 = vsub.f32 0.0, %v1244
        %v1264 = vsub.f32 0.0, %v1245
        %v1265 = vsub.f32 0.0, %v1246
        %v1266 = vsub.f32 0.0, %v1247
        %v1267 = vsub.f32 0.0, %v1248
        %v1268 = vsub.f32 0.0, %v1249
        %v1269 = vsub.f32 0.0, %v1250
        %v1270 = vsub.f32 0.0, %v1251
        %v1271 = vsub.f32 0.0, %v1252
        %v1272 = vsub.f32 0.0, %v1253
        %v1273 = vsub.f32 0.0, %v1254
        %v1274 = vsub.f32 0.0, %v1255
        %v1275 = vsub.f32 0.0, %v1256
        %v1276 = vmul.f32 %v1257, 1.442695
        %v1277 = vpow.pop %v1276
        %v1278 = vmul.f32 %v1258, 1.442695
        %v1279 = vpow.pop %v1278
        %v1280 = vmul.f32 %v1259, 1.442695
        %v1281 = vpow.pop %v1280
        %v1282 = vmul.f32 %v1260, 1.442695
        %v1283 = vpow.pop %v1282
        %v1284 = vmul.f32 %v1261, 1.442695
        %v1285 = vpow.pop %v1284
        %v1286 = vmul.f32 %v1262, 1.442695
        %v1287 = vpow.pop %v1286
        %v1288 = vmul.f32 %v1263, 1.442695
        %v1289 = vpow.pop %v1288
        %v1290 = vmul.f32 %v1264, 1.442695
        %v1291 = vpow.pop %v1290
        %v1292 = vmul.f32 %v1265, 1.442695
        %v1293 = vpow.pop %v1292
        %v1294 = vmul.f32 %v1266, 1.442695
        %v1295 = vpow.pop %v1294
        %v1296 = vmul.f32 %v1267, 1.442695
        %v1297 = vpow.pop %v1296
        %v1298 = vmul.f32 %v1268, 1.442695
        %v1299 = vpow.pop %v1298
        %v1300 = vmul.f32 %v1269, 1.442695
        %v1301 = vpow.pop %v1300
        %v1302 = vmul.f32 %v1270, 1.442695
        %v1303 = vpow.pop %v1302
        %v1304 = vmul.f32 %v1271, 1.442695
        %v1305 = vpow.pop %v1304
        %v1306 = vmul.f32 %v1272, 1.442695
        %v1307 = vpow.pop %v1306
        %v1308 = vmul.f32 %v1273, 1.442695
        %v1309 = vpow.pop %v1308
        %v1310 = vmul.f32 %v1274, 1.442695
        %v1311 = vpow.pop %v1310
        %v1312 = vmul.f32 %v1275, 1.442695
        %v1313 = vpow.pop %v1312
        %v1314 = vadd.f32 %v1277, 1.0
        %v1315 = vadd.f32 %v1279, 1.0
        %v1316 = vadd.f32 %v1281, 1.0
        %v1317 = vadd.f32 %v1283, 1.0
        %v1318 = vadd.f32 %v1285, 1.0
        %v1319 = vadd.f32 %v1287, 1.0
        %v1320 = vadd.f32 %v1289, 1.0
        %v1321 = vadd.f32 %v1291, 1.0
        %v1322 = vadd.f32 %v1293, 1.0
        %v1323 = vadd.f32 %v1295, 1.0
        %v1324 = vadd.f32 %v1297, 1.0
        %v1325 = vadd.f32 %v1299, 1.0
        %v1326 = vadd.f32 %v1301, 1.0
        %v1327 = vadd.f32 %v1303, 1.0
        %v1328 = vadd.f32 %v1305, 1.0
        %v1329 = vadd.f32 %v1307, 1.0
        %v1330 = vadd.f32 %v1309, 1.0
        %v1331 = vadd.f32 %v1311, 1.0
        %v1332 = vadd.f32 %v1313, 1.0
        %v1333 = vrcp.pop %v1314
        %v1334 = vrcp.pop %v1315
        %v1335 = vrcp.pop %v1316
        %v1336 = vrcp.pop %v1317
        %v1337 = vrcp.pop %v1318
        %v1338 = vrcp.pop %v1319
        %v1339 = vrcp.pop %v1320
        %v1340 = vrcp.pop %v1321
        %v1341 = vrcp.pop %v1322
        %v1342 = vrcp.pop %v1323
        %v1343 = vrcp.pop %v1324
        %v1344 = vrcp.pop %v1325
        %v1345 = vrcp.pop %v1326
        %v1346 = vrcp.pop %v1327
        %v1347 = vrcp.pop %v1328
        %v1348 = vrcp.pop %v1329
        %v1349 = vrcp.pop %v1330
        %v1350 = vrcp.pop %v1331
        %v1351 = vrcp.pop %v1332
        %v1352 = vmul.f32 %v1238, %v1333
        %v1353 = vmul.f32 %v1239, %v1334
        %v1354 = vmul.f32 %v1240, %v1335
        %v1355 = vmul.f32 %v1241, %v1336
        %v1356 = vmul.f32 %v1242, %v1337
        %v1357 = vmul.f32 %v1243, %v1338
        %v1358 = vmul.f32 %v1244, %v1339
        %v1359 = vmul.f32 %v1245, %v1340
        %v1360 = vmul.f32 %v1246, %v1341
        %v1361 = vmul.f32 %v1247, %v1342
        %v1362 = vmul.f32 %v1248, %v1343
        %v1363 = vmul.f32 %v1249, %v1344
        %v1364 = vmul.f32 %v1250, %v1345
        %v1365 = vmul.f32 %v1251, %v1346
        %v1366 = vmul.f32 %v1252, %v1347
        %v1367 = vmul.f32 %v1253, %v1348
        %v1368 = vmul.f32 %v1254, %v1349
        %v1369 = vmul.f32 %v1255, %v1350
        %v1370 = vmul.f32 %v1256, %v1351
        %s1371 = scalar_lea.vmem %s6, 1
        %v1372 = vld [vmem:[%s1371] sm:$0x1]
        %v1374 = vlaneseq
        %v1375 = vshrl.u32 %v1374, 7
        %v1376 = vsub.s32 0, %v1375
        %v1377 = vrot.slane %v1372, %v1376
        %v1379 = vmul.f32 %v529, %v1377
        %v1380 = vmul.f32 %v534, %v1377
        %v1381 = vmul.f32 %v539, %v1377
        %v1382 = vmul.f32 %v544, %v1377
        %v1383 = vmul.f32 %v549, %v1377
        %v1384 = vmul.f32 %v554, %v1377
        %v1385 = vmul.f32 %v559, %v1377
        %v1386 = vmul.f32 %v564, %v1377
        %v1387 = vmul.f32 %v569, %v1377
        %v1388 = vmul.f32 %v574, %v1377
        %v1389 = vmul.f32 %v579, %v1377
        %v1390 = vmul.f32 %v584, %v1377
        %v1391 = vmul.f32 %v589, %v1377
        %v1392 = vmul.f32 %v594, %v1377
        %v1393 = vmul.f32 %v599, %v1377
        %v1394 = vmul.f32 %v604, %v1377
        %v1395 = vmul.f32 %v609, %v1377
        %v1396 = vmul.f32 %v614, %v1377
        %v1397 = vmul.f32 %v619, %v1377
        %s1398 = scalar_lea.vmem [#allocation7], 1
        %v1399 = vld [vmem:[%s1398] sm:$0x1]
        %v1401 = vlaneseq
        %v1402 = vshrl.u32 %v1401, 7
        %v1403 = vsub.s32 0, %v1402
        %v1404 = vrot.slane %v1399, %v1403
        %v1406 = vadd.f32 %v1379, %v1404
        %v1407 = vadd.f32 %v1380, %v1404
        %v1408 = vadd.f32 %v1381, %v1404
        %v1409 = vadd.f32 %v1382, %v1404
        %v1410 = vadd.f32 %v1383, %v1404
        %v1411 = vadd.f32 %v1384, %v1404
        %v1412 = vadd.f32 %v1385, %v1404
        %v1413 = vadd.f32 %v1386, %v1404
        %v1414 = vadd.f32 %v1387, %v1404
        %v1415 = vadd.f32 %v1388, %v1404
        %v1416 = vadd.f32 %v1389, %v1404
        %v1417 = vadd.f32 %v1390, %v1404
        %v1418 = vadd.f32 %v1391, %v1404
        %v1419 = vadd.f32 %v1392, %v1404
        %v1420 = vadd.f32 %v1393, %v1404
        %v1421 = vadd.f32 %v1394, %v1404
        %v1422 = vadd.f32 %v1395, %v1404
        %v1423 = vadd.f32 %v1396, %v1404
        %v1424 = vadd.f32 %v1397, %v1404
        %s1425 = scalar_lea.vmem %s5, 128
        %v1426 = vld [vmem:[%s1425] sm:$0xff]
        %v1427 = vld [vmem:[%s1425 + $0x8] sm:$0xff]
        %v1428 = vld [vmem:[%s1425 + $0x10] sm:$0xff]
        %v1429 = vld [vmem:[%s1425 + $0x18] sm:$0xff]
        %v1430 = vld [vmem:[%s1425 + $0x20] sm:$0xff]
        %v1431 = vld [vmem:[%s1425 + $0x28] sm:$0xff]
        %v1432 = vld [vmem:[%s1425 + $0x30] sm:$0xff]
        %v1433 = vld [vmem:[%s1425 + $0x38] sm:$0xff]
        %v1434 = vld [vmem:[%s1425 + $0x40] sm:$0xff]
        %v1435 = vld [vmem:[%s1425 + $0x48] sm:$0xff]
        %v1436 = vld [vmem:[%s1425 + $0x50] sm:$0xff]
        %v1437 = vld [vmem:[%s1425 + $0x58] sm:$0xff]
        %v1438 = vld [vmem:[%s1425 + $0x60] sm:$0xff]
        %v1439 = vld [vmem:[%s1425 + $0x68] sm:$0xff]
        %v1440 = vld [vmem:[%s1425 + $0x70] sm:$0xff]
        %v1441 = vld [vmem:[%s1425 + $0x78] sm:$0xff]
        %1442 = vmatprep.subr.mxu0 0.0
        %1443 = vmatpush1.msra.mxu0 %v1426
        %1444 = vmatprep.subr.mxu0 0.0
        %1445 = vmatpush1.msra.mxu0 %v1427
        %1446 = vmatprep.subr.mxu0 0.0
        %1447 = vmatpush1.msra.mxu0 %v1428
        %1448 = vmatprep.subr.mxu0 0.0
        %1449 = vmatpush1.msra.mxu0 %v1429
        %1450 = vmatprep.subr.mxu0 0.0
        %1451 = vmatpush1.msra.mxu0 %v1430
        %1452 = vmatprep.subr.mxu0 0.0
        %1453 = vmatpush1.msra.mxu0 %v1431
        %1454 = vmatprep.subr.mxu0 0.0
        %1455 = vmatpush1.msra.mxu0 %v1432
        %1456 = vmatprep.subr.mxu0 0.0
        %1457 = vmatpush1.msra.mxu0 %v1433
        %1458 = vmatprep.subr.mxu0 0.0
        %1459 = vmatpush1.msra.mxu0 %v1434
        %1460 = vmatprep.subr.mxu0 0.0
        %1461 = vmatpush1.msra.mxu0 %v1435
        %1462 = vmatprep.subr.mxu0 0.0
        %1463 = vmatpush1.msra.mxu0 %v1436
        %1464 = vmatprep.subr.mxu0 0.0
        %1465 = vmatpush1.msra.mxu0 %v1437
        %1466 = vmatprep.subr.mxu0 0.0
        %1467 = vmatpush1.msra.mxu0 %v1438
        %1468 = vmatprep.subr.mxu0 0.0
        %1469 = vmatpush1.msra.mxu0 %v1439
        %1470 = vmatprep.subr.mxu0 0.0
        %1471 = vmatpush1.msra.mxu0 %v1440
        %1472 = vmatprep.subr.mxu0 0.0
        %1473 = vmatpush1.msra.mxu0 %v1441
        %1474 = vmatprep.subr.mxu0 0.0
        %1475 = vmatpush1.msra.mxu0 0.0
        %1476 = vmatprep.subr.mxu0 0.0
        %1477 = vmatpush1.msra.mxu0 0.0
        %1478 = vmatprep.subr.mxu0 0.0
        %1479 = vmatpush1.msra.mxu0 0.0
        %1480 = vmatprep.subr.mxu0 0.0
        %1481 = vmatpush1.msra.mxu0 0.0
        %1482 = vmatprep.subr.mxu0 0.0
        %1483 = vmatpush1.msra.mxu0 0.0
        %1484 = vmatprep.subr.mxu0 0.0
        %1485 = vmatpush1.msra.mxu0 0.0
        %1486 = vmatprep.subr.mxu0 0.0
        %1487 = vmatpush1.msra.mxu0 0.0
        %1488 = vmatprep.subr.mxu0 0.0
        %1489 = vmatpush1.msra.mxu0 0.0
        %1490 = vmatprep.subr.mxu0 0.0
        %1491 = vmatpush1.msra.mxu0 0.0
        %1492 = vmatprep.subr.mxu0 0.0
        %1493 = vmatpush1.msra.mxu0 0.0
        %1494 = vmatprep.subr.mxu0 0.0
        %1495 = vmatpush1.msra.mxu0 0.0
        %1496 = vmatprep.subr.mxu0 0.0
        %1497 = vmatpush1.msra.mxu0 0.0
        %1498 = vmatprep.subr.mxu0 0.0
        %1499 = vmatpush1.msra.mxu0 0.0
        %1500 = vmatprep.subr.mxu0 0.0
        %1501 = vmatpush1.msra.mxu0 0.0
        %1502 = vmatprep.subr.mxu0 0.0
        %1503 = vmatpush1.msra.mxu0 0.0
        %1504 = vmatprep.subr.mxu0 0.0
        %1505 = vmatpush1.msra.mxu0 0.0
        %1506 = vmatprep.mubr.f32.mxu0 0.0
        %1507 = vmatmul.mubr.f32.gmra.mrb[0].mxu0 %v1352
        %v1508 = vpop.f32.mrb[0].mxu0
        %v1509 = vadd.f32 %v1406, %v1508
        %v1510 = vpop.f32.mrb[0].mxu0
        %1511 = vmatprep.mubr.f32.mxu0 0.0
        %1512 = vmatmul.mubr.f32.gmra.mrb[0].mxu0 %v1353
        %v1513 = vpop.f32.mrb[0].mxu0
        %v1514 = vadd.f32 %v1407, %v1513
        %v1515 = vpop.f32.mrb[0].mxu0
        %1516 = vmatprep.mubr.f32.mxu0 0.0
        %1517 = vmatmul.mubr.f32.gmra.mrb[0].mxu0 %v1354
        %v1518 = vpop.f32.mrb[0].mxu0
        %v1519 = vadd.f32 %v1408, %v1518
        %v1520 = vpop.f32.mrb[0].mxu0
        %1521 = vmatprep.mubr.f32.mxu0 0.0
        %1522 = vmatmul.mubr.f32.gmra.mrb[0].mxu0 %v1355
        %v1523 = vpop.f32.mrb[0].mxu0
        %v1524 = vadd.f32 %v1409, %v1523
        %v1525 = vpop.f32.mrb[0].mxu0
        %1526 = vmatprep.mubr.f32.mxu0 0.0
        %1527 = vmatmul.mubr.f32.gmra.mrb[0].mxu0 %v1356
        %v1528 = vpop.f32.mrb[0].mxu0
        %v1529 = vadd.f32 %v1410, %v1528
        %v1530 = vpop.f32.mrb[0].mxu0
        %1531 = vmatprep.mubr.f32.mxu0 0.0
        %1532 = vmatmul.mubr.f32.gmra.mrb[0].mxu0 %v1357
        %v1533 = vpop.f32.mrb[0].mxu0
        %v1534 = vadd.f32 %v1411, %v1533
        %v1535 = vpop.f32.mrb[0].mxu0
        %1536 = vmatprep.mubr.f32.mxu0 0.0
        %1537 = vmatmul.mubr.f32.gmra.mrb[0].mxu0 %v1358
        %v1538 = vpop.f32.mrb[0].mxu0
        %v1539 = vadd.f32 %v1412, %v1538
        %v1540 = vpop.f32.mrb[0].mxu0
        %1541 = vmatprep.mubr.f32.mxu0 0.0
        %1542 = vmatmul.mubr.f32.gmra.mrb[0].mxu0 %v1359
        %v1543 = vpop.f32.mrb[0].mxu0
        %v1544 = vadd.f32 %v1413, %v1543
        %v1545 = vpop.f32.mrb[0].mxu0
        %1546 = vmatprep.mubr.f32.mxu0 0.0
        %1547 = vmatmul.mubr.f32.gmra.mrb[0].mxu0 %v1360
        %v1548 = vpop.f32.mrb[0].mxu0
        %v1549 = vadd.f32 %v1414, %v1548
        %v1550 = vpop.f32.mrb[0].mxu0
        %1551 = vmatprep.mubr.f32.mxu0 0.0
        %1552 = vmatmul.mubr.f32.gmra.mrb[0].mxu0 %v1361
        %v1553 = vpop.f32.mrb[0].mxu0
        %v1554 = vadd.f32 %v1415, %v1553
        %v1555 = vpop.f32.mrb[0].mxu0
        %1556 = vmatprep.mubr.f32.mxu0 0.0
        %1557 = vmatmul.mubr.f32.gmra.mrb[0].mxu0 %v1362
        %v1558 = vpop.f32.mrb[0].mxu0
        %v1559 = vadd.f32 %v1416, %v1558
        %v1560 = vpop.f32.mrb[0].mxu0
        %1561 = vmatprep.mubr.f32.mxu0 0.0
        %1562 = vmatmul.mubr.f32.gmra.mrb[0].mxu0 %v1363
        %v1563 = vpop.f32.mrb[0].mxu0
        %v1564 = vadd.f32 %v1417, %v1563
        %v1565 = vpop.f32.mrb[0].mxu0
        %1566 = vmatprep.mubr.f32.mxu0 0.0
        %1567 = vmatmul.mubr.f32.gmra.mrb[0].mxu0 %v1364
        %v1568 = vpop.f32.mrb[0].mxu0
        %v1569 = vadd.f32 %v1418, %v1568
        %v1570 = vpop.f32.mrb[0].mxu0
        %1571 = vmatprep.mubr.f32.mxu0 0.0
        %1572 = vmatmul.mubr.f32.gmra.mrb[0].mxu0 %v1365
        %v1573 = vpop.f32.mrb[0].mxu0
        %v1574 = vadd.f32 %v1419, %v1573
        %v1575 = vpop.f32.mrb[0].mxu0
        %1576 = vmatprep.mubr.f32.mxu0 0.0
        %1577 = vmatmul.mubr.f32.gmra.mrb[0].mxu0 %v1366
        %v1578 = vpop.f32.mrb[0].mxu0
        %v1579 = vadd.f32 %v1420, %v1578
        %v1580 = vpop.f32.mrb[0].mxu0
        %1581 = vmatprep.mubr.f32.mxu0 0.0
        %1582 = vmatmul.mubr.f32.gmra.mrb[0].mxu0 %v1367
        %v1583 = vpop.f32.mrb[0].mxu0
        %v1584 = vadd.f32 %v1421, %v1583
        %v1585 = vpop.f32.mrb[0].mxu0
        %1586 = vmatprep.mubr.f32.mxu0 0.0
        %1587 = vmatmul.mubr.f32.gmra.mrb[0].mxu0 %v1368
        %v1588 = vpop.f32.mrb[0].mxu0
        %v1589 = vadd.f32 %v1422, %v1588
        %v1590 = vpop.f32.mrb[0].mxu0
        %1591 = vmatprep.mubr.f32.mxu0 0.0
        %1592 = vmatmul.mubr.f32.gmra.mrb[0].mxu0 %v1369
        %v1593 = vpop.f32.mrb[0].mxu0
        %v1594 = vadd.f32 %v1423, %v1593
        %v1595 = vpop.f32.mrb[0].mxu0
        %1596 = vmatprep.mubr.f32.mxu0 0.0
        %1597 = vmatmul.mubr.f32.gmra.mrb[0].mxu0 %v1370
        %v1598 = vpop.f32.mrb[0].mxu0
        %v1599 = vadd.f32 %v1424, %v1598
        %v1600 = vpop.f32.mrb[0].mxu0
        %1601 = vdwg.mxu0
        %v1602 = vadd.f32 %v1352, %v1509
        %v1603 = vadd.f32 %v1353, %v1514
        %v1604 = vadd.f32 %v1354, %v1519
        %v1605 = vadd.f32 %v1355, %v1524
        %v1606 = vadd.f32 %v1356, %v1529
        %v1607 = vadd.f32 %v1357, %v1534
        %v1608 = vadd.f32 %v1358, %v1539
        %v1609 = vadd.f32 %v1359, %v1544
        %v1610 = vadd.f32 %v1360, %v1549
        %v1611 = vadd.f32 %v1361, %v1554
        %v1612 = vadd.f32 %v1362, %v1559
        %v1613 = vadd.f32 %v1363, %v1564
        %v1614 = vadd.f32 %v1364, %v1569
        %v1615 = vadd.f32 %v1365, %v1574
        %v1616 = vadd.f32 %v1366, %v1579
        %v1617 = vadd.f32 %v1367, %v1584
        %v1618 = vadd.f32 %v1368, %v1589
        %v1619 = vadd.f32 %v1369, %v1594
        %v1620 = vadd.f32 %v1370, %v1599
        %v1621 = vsub.f32 0.0, %v1602
        %v1622 = vsub.f32 0.0, %v1603
        %v1623 = vsub.f32 0.0, %v1604
        %v1624 = vsub.f32 0.0, %v1605
        %v1625 = vsub.f32 0.0, %v1606
        %v1626 = vsub.f32 0.0, %v1607
        %v1627 = vsub.f32 0.0, %v1608
        %v1628 = vsub.f32 0.0, %v1609
        %v1629 = vsub.f32 0.0, %v1610
        %v1630 = vsub.f32 0.0, %v1611
        %v1631 = vsub.f32 0.0, %v1612
        %v1632 = vsub.f32 0.0, %v1613
        %v1633 = vsub.f32 0.0, %v1614
        %v1634 = vsub.f32 0.0, %v1615
        %v1635 = vsub.f32 0.0, %v1616
        %v1636 = vsub.f32 0.0, %v1617
        %v1637 = vsub.f32 0.0, %v1618
        %v1638 = vsub.f32 0.0, %v1619
        %v1639 = vsub.f32 0.0, %v1620
        %v1640 = vmul.f32 %v1621, 1.442695
        %v1641 = vpow.pop %v1640
        %v1642 = vmul.f32 %v1622, 1.442695
        %v1643 = vpow.pop %v1642
        %v1644 = vmul.f32 %v1623, 1.442695
        %v1645 = vpow.pop %v1644
        %v1646 = vmul.f32 %v1624, 1.442695
        %v1647 = vpow.pop %v1646
        %v1648 = vmul.f32 %v1625, 1.442695
        %v1649 = vpow.pop %v1648
        %v1650 = vmul.f32 %v1626, 1.442695
        %v1651 = vpow.pop %v1650
        %v1652 = vmul.f32 %v1627, 1.442695
        %v1653 = vpow.pop %v1652
        %v1654 = vmul.f32 %v1628, 1.442695
        %v1655 = vpow.pop %v1654
        %v1656 = vmul.f32 %v1629, 1.442695
        %v1657 = vpow.pop %v1656
        %v1658 = vmul.f32 %v1630, 1.442695
        %v1659 = vpow.pop %v1658
        %v1660 = vmul.f32 %v1631, 1.442695
        %v1661 = vpow.pop %v1660
        %v1662 = vmul.f32 %v1632, 1.442695
        %v1663 = vpow.pop %v1662
        %v1664 = vmul.f32 %v1633, 1.442695
        %v1665 = vpow.pop %v1664
        %v1666 = vmul.f32 %v1634, 1.442695
        %v1667 = vpow.pop %v1666
        %v1668 = vmul.f32 %v1635, 1.442695
        %v1669 = vpow.pop %v1668
        %v1670 = vmul.f32 %v1636, 1.442695
        %v1671 = vpow.pop %v1670
        %v1672 = vmul.f32 %v1637, 1.442695
        %v1673 = vpow.pop %v1672
        %v1674 = vmul.f32 %v1638, 1.442695
        %v1675 = vpow.pop %v1674
        %v1676 = vmul.f32 %v1639, 1.442695
        %v1677 = vpow.pop %v1676
        %v1678 = vadd.f32 %v1641, 1.0
        %v1679 = vadd.f32 %v1643, 1.0
        %v1680 = vadd.f32 %v1645, 1.0
        %v1681 = vadd.f32 %v1647, 1.0
        %v1682 = vadd.f32 %v1649, 1.0
        %v1683 = vadd.f32 %v1651, 1.0
        %v1684 = vadd.f32 %v1653, 1.0
        %v1685 = vadd.f32 %v1655, 1.0
        %v1686 = vadd.f32 %v1657, 1.0
        %v1687 = vadd.f32 %v1659, 1.0
        %v1688 = vadd.f32 %v1661, 1.0
        %v1689 = vadd.f32 %v1663, 1.0
        %v1690 = vadd.f32 %v1665, 1.0
        %v1691 = vadd.f32 %v1667, 1.0
        %v1692 = vadd.f32 %v1669, 1.0
        %v1693 = vadd.f32 %v1671, 1.0
        %v1694 = vadd.f32 %v1673, 1.0
        %v1695 = vadd.f32 %v1675, 1.0
        %v1696 = vadd.f32 %v1677, 1.0
        %v1697 = vrcp.pop %v1678
        %v1698 = vrcp.pop %v1679
        %v1699 = vrcp.pop %v1680
        %v1700 = vrcp.pop %v1681
        %v1701 = vrcp.pop %v1682
        %v1702 = vrcp.pop %v1683
        %v1703 = vrcp.pop %v1684
        %v1704 = vrcp.pop %v1685
        %v1705 = vrcp.pop %v1686
        %v1706 = vrcp.pop %v1687
        %v1707 = vrcp.pop %v1688
        %v1708 = vrcp.pop %v1689
        %v1709 = vrcp.pop %v1690
        %v1710 = vrcp.pop %v1691
        %v1711 = vrcp.pop %v1692
        %v1712 = vrcp.pop %v1693
        %v1713 = vrcp.pop %v1694
        %v1714 = vrcp.pop %v1695
        %v1715 = vrcp.pop %v1696
        %v1716 = vmul.f32 %v1602, %v1697
        %v1717 = vmul.f32 %v1603, %v1698
        %v1718 = vmul.f32 %v1604, %v1699
        %v1719 = vmul.f32 %v1605, %v1700
        %v1720 = vmul.f32 %v1606, %v1701
        %v1721 = vmul.f32 %v1607, %v1702
        %v1722 = vmul.f32 %v1608, %v1703
        %v1723 = vmul.f32 %v1609, %v1704
        %v1724 = vmul.f32 %v1610, %v1705
        %v1725 = vmul.f32 %v1611, %v1706
        %v1726 = vmul.f32 %v1612, %v1707
        %v1727 = vmul.f32 %v1613, %v1708
        %v1728 = vmul.f32 %v1614, %v1709
        %v1729 = vmul.f32 %v1615, %v1710
        %v1730 = vmul.f32 %v1616, %v1711
        %v1731 = vmul.f32 %v1617, %v1712
        %v1732 = vmul.f32 %v1618, %v1713
        %v1733 = vmul.f32 %v1619, %v1714
        %v1734 = vmul.f32 %v1620, %v1715
        %s1735 = scalar_lea.vmem %s6, 2
        %v1736 = vld [vmem:[%s1735] sm:$0x1]
        %v1738 = vlaneseq
        %v1739 = vshrl.u32 %v1738, 7
        %v1740 = vsub.s32 0, %v1739
        %v1741 = vrot.slane %v1736, %v1740
        %v1743 = vmul.f32 %v529, %v1741
        %v1744 = vmul.f32 %v534, %v1741
        %v1745 = vmul.f32 %v539, %v1741
        %v1746 = vmul.f32 %v544, %v1741
        %v1747 = vmul.f32 %v549, %v1741
        %v1748 = vmul.f32 %v554, %v1741
        %v1749 = vmul.f32 %v559, %v1741
        %v1750 = vmul.f32 %v564, %v1741
        %v1751 = vmul.f32 %v569, %v1741
        %v1752 = vmul.f32 %v574, %v1741
        %v1753 = vmul.f32 %v579, %v1741
        %v1754 = vmul.f32 %v584, %v1741
        %v1755 = vmul.f32 %v589, %v1741
        %v1756 = vmul.f32 %v594, %v1741
        %v1757 = vmul.f32 %v599, %v1741
        %v1758 = vmul.f32 %v604, %v1741
        %v1759 = vmul.f32 %v609, %v1741
        %v1760 = vmul.f32 %v614, %v1741
        %v1761 = vmul.f32 %v619, %v1741
        %s1762 = scalar_lea.vmem [#allocation7], 2
        %v1763 = vld [vmem:[%s1762] sm:$0x1]
        %v1765 = vlaneseq
        %v1766 = vshrl.u32 %v1765, 7
        %v1767 = vsub.s32 0, %v1766
        %v1768 = vrot.slane %v1763, %v1767
        %v1770 = vadd.f32 %v1743, %v1768
        %v1771 = vadd.f32 %v1744, %v1768
        %v1772 = vadd.f32 %v1745, %v1768
        %v1773 = vadd.f32 %v1746, %v1768
        %v1774 = vadd.f32 %v1747, %v1768
        %v1775 = vadd.f32 %v1748, %v1768
        %v1776 = vadd.f32 %v1749, %v1768
        %v1777 = vadd.f32 %v1750, %v1768
        %v1778 = vadd.f32 %v1751, %v1768
        %v1779 = vadd.f32 %v1752, %v1768
        %v1780 = vadd.f32 %v1753, %v1768
        %v1781 = vadd.f32 %v1754, %v1768
        %v1782 = vadd.f32 %v1755, %v1768
        %v1783 = vadd.f32 %v1756, %v1768
        %v1784 = vadd.f32 %v1757, %v1768
        %v1785 = vadd.f32 %v1758, %v1768
        %v1786 = vadd.f32 %v1759, %v1768
        %v1787 = vadd.f32 %v1760, %v1768
        %v1788 = vadd.f32 %v1761, %v1768
        %s1789 = scalar_lea.vmem %s5, 256
        %v1790 = vld [vmem:[%s1789] sm:$0xff]
        %v1791 = vld [vmem:[%s1789 + $0x8] sm:$0xff]
        %v1792 = vld [vmem:[%s1789 + $0x10] sm:$0xff]
        %v1793 = vld [vmem:[%s1789 + $0x18] sm:$0xff]
        %v1794 = vld [vmem:[%s1789 + $0x20] sm:$0xff]
        %v1795 = vld [vmem:[%s1789 + $0x28] sm:$0xff]
        %v1796 = vld [vmem:[%s1789 + $0x30] sm:$0xff]
        %v1797 = vld [vmem:[%s1789 + $0x38] sm:$0xff]
        %v1798 = vld [vmem:[%s1789 + $0x40] sm:$0xff]
        %v1799 = vld [vmem:[%s1789 + $0x48] sm:$0xff]
        %v1800 = vld [vmem:[%s1789 + $0x50] sm:$0xff]
        %v1801 = vld [vmem:[%s1789 + $0x58] sm:$0xff]
        %v1802 = vld [vmem:[%s1789 + $0x60] sm:$0xff]
        %v1803 = vld [vmem:[%s1789 + $0x68] sm:$0xff]
        %v1804 = vld [vmem:[%s1789 + $0x70] sm:$0xff]
        %v1805 = vld [vmem:[%s1789 + $0x78] sm:$0xff]
        %1806 = vmatprep.subr.mxu0 0.0
        %1807 = vmatpush1.msra.mxu0 %v1790
        %1808 = vmatprep.subr.mxu0 0.0
        %1809 = vmatpush1.msra.mxu0 %v1791
        %1810 = vmatprep.subr.mxu0 0.0
        %1811 = vmatpush1.msra.mxu0 %v1792
        %1812 = vmatprep.subr.mxu0 0.0
        %1813 = vmatpush1.msra.mxu0 %v1793
        %1814 = vmatprep.subr.mxu0 0.0
        %1815 = vmatpush1.msra.mxu0 %v1794
        %1816 = vmatprep.subr.mxu0 0.0
        %1817 = vmatpush1.msra.mxu0 %v1795
        %1818 = vmatprep.subr.mxu0 0.0
        %1819 = vmatpush1.msra.mxu0 %v1796
        %1820 = vmatprep.subr.mxu0 0.0
        %1821 = vmatpush1.msra.mxu0 %v1797
        %1822 = vmatprep.subr.mxu0 0.0
        %1823 = vmatpush1.msra.mxu0 %v1798
        %1824 = vmatprep.subr.mxu0 0.0
        %1825 = vmatpush1.msra.mxu0 %v1799
        %1826 = vmatprep.subr.mxu0 0.0
        %1827 = vmatpush1.msra.mxu0 %v1800
        %1828 = vmatprep.subr.mxu0 0.0
        %1829 = vmatpush1.msra.mxu0 %v1801
        %1830 = vmatprep.subr.mxu0 0.0
        %1831 = vmatpush1.msra.mxu0 %v1802
        %1832 = vmatprep.subr.mxu0 0.0
        %1833 = vmatpush1.msra.mxu0 %v1803
        %1834 = vmatprep.subr.mxu0 0.0
        %1835 = vmatpush1.msra.mxu0 %v1804
        %1836 = vmatprep.subr.mxu0 0.0
        %1837 = vmatpush1.msra.mxu0 %v1805
        %1838 = vmatprep.subr.mxu0 0.0
        %1839 = vmatpush1.msra.mxu0 0.0
        %1840 = vmatprep.subr.mxu0 0.0
        %1841 = vmatpush1.msra.mxu0 0.0
        %1842 = vmatprep.subr.mxu0 0.0
        %1843 = vmatpush1.msra.mxu0 0.0
        %1844 = vmatprep.subr.mxu0 0.0
        %1845 = vmatpush1.msra.mxu0 0.0
        %1846 = vmatprep.subr.mxu0 0.0
        %1847 = vmatpush1.msra.mxu0 0.0
        %1848 = vmatprep.subr.mxu0 0.0
        %1849 = vmatpush1.msra.mxu0 0.0
        %1850 = vmatprep.subr.mxu0 0.0
        %1851 = vmatpush1.msra.mxu0 0.0
        %1852 = vmatprep.subr.mxu0 0.0
        %1853 = vmatpush1.msra.mxu0 0.0
        %1854 = vmatprep.subr.mxu0 0.0
        %1855 = vmatpush1.msra.mxu0 0.0
        %1856 = vmatprep.subr.mxu0 0.0
        %1857 = vmatpush1.msra.mxu0 0.0
        %1858 = vmatprep.subr.mxu0 0.0
        %1859 = vmatpush1.msra.mxu0 0.0
        %1860 = vmatprep.subr.mxu0 0.0
        %1861 = vmatpush1.msra.mxu0 0.0
        %1862 = vmatprep.subr.mxu0 0.0
        %1863 = vmatpush1.msra.mxu0 0.0
        %1864 = vmatprep.subr.mxu0 0.0
        %1865 = vmatpush1.msra.mxu0 0.0
        %1866 = vmatprep.subr.mxu0 0.0
        %1867 = vmatpush1.msra.mxu0 0.0
        %1868 = vmatprep.subr.mxu0 0.0
        %1869 = vmatpush1.msra.mxu0 0.0
        %1870 = vmatprep.mubr.f32.mxu0 0.0
        %1871 = vmatmul.mubr.f32.gmra.mrb[0].mxu0 %v1716
        %v1872 = vpop.f32.mrb[0].mxu0
        %v1873 = vadd.f32 %v1770, %v1872
        %v1874 = vpop.f32.mrb[0].mxu0
        %1875 = vmatprep.mubr.f32.mxu0 0.0
        %1876 = vmatmul.mubr.f32.gmra.mrb[0].mxu0 %v1717
        %v1877 = vpop.f32.mrb[0].mxu0
        %v1878 = vadd.f32 %v1771, %v1877
        %v1879 = vpop.f32.mrb[0].mxu0
        %1880 = vmatprep.mubr.f32.mxu0 0.0
        %1881 = vmatmul.mubr.f32.gmra.mrb[0].mxu0 %v1718
        %v1882 = vpop.f32.mrb[0].mxu0
        %v1883 = vadd.f32 %v1772, %v1882
        %v1884 = vpop.f32.mrb[0].mxu0
        %1885 = vmatprep.mubr.f32.mxu0 0.0
        %1886 = vmatmul.mubr.f32.gmra.mrb[0].mxu0 %v1719
        %v1887 = vpop.f32.mrb[0].mxu0
        %v1888 = vadd.f32 %v1773, %v1887
        %v1889 = vpop.f32.mrb[0].mxu0
        %1890 = vmatprep.mubr.f32.mxu0 0.0
        %1891 = vmatmul.mubr.f32.gmra.mrb[0].mxu0 %v1720
        %v1892 = vpop.f32.mrb[0].mxu0
        %v1893 = vadd.f32 %v1774, %v1892
        %v1894 = vpop.f32.mrb[0].mxu0
        %1895 = vmatprep.mubr.f32.mxu0 0.0
        %1896 = vmatmul.mubr.f32.gmra.mrb[0].mxu0 %v1721
        %v1897 = vpop.f32.mrb[0].mxu0
        %v1898 = vadd.f32 %v1775, %v1897
        %v1899 = vpop.f32.mrb[0].mxu0
        %1900 = vmatprep.mubr.f32.mxu0 0.0
        %1901 = vmatmul.mubr.f32.gmra.mrb[0].mxu0 %v1722
        %v1902 = vpop.f32.mrb[0].mxu0
        %v1903 = vadd.f32 %v1776, %v1902
        %v1904 = vpop.f32.mrb[0].mxu0
        %1905 = vmatprep.mubr.f32.mxu0 0.0
        %1906 = vmatmul.mubr.f32.gmra.mrb[0].mxu0 %v1723
        %v1907 = vpop.f32.mrb[0].mxu0
        %v1908 = vadd.f32 %v1777, %v1907
        %v1909 = vpop.f32.mrb[0].mxu0
        %1910 = vmatprep.mubr.f32.mxu0 0.0
        %1911 = vmatmul.mubr.f32.gmra.mrb[0].mxu0 %v1724
        %v1912 = vpop.f32.mrb[0].mxu0
        %v1913 = vadd.f32 %v1778, %v1912
        %v1914 = vpop.f32.mrb[0].mxu0
        %1915 = vmatprep.mubr.f32.mxu0 0.0
        %1916 = vmatmul.mubr.f32.gmra.mrb[0].mxu0 %v1725
        %v1917 = vpop.f32.mrb[0].mxu0
        %v1918 = vadd.f32 %v1779, %v1917
        %v1919 = vpop.f32.mrb[0].mxu0
        %1920 = vmatprep.mubr.f32.mxu0 0.0
        %1921 = vmatmul.mubr.f32.gmra.mrb[0].mxu0 %v1726
        %v1922 = vpop.f32.mrb[0].mxu0
        %v1923 = vadd.f32 %v1780, %v1922
        %v1924 = vpop.f32.mrb[0].mxu0
        %1925 = vmatprep.mubr.f32.mxu0 0.0
        %1926 = vmatmul.mubr.f32.gmra.mrb[0].mxu0 %v1727
        %v1927 = vpop.f32.mrb[0].mxu0
        %v1928 = vadd.f32 %v1781, %v1927
        %v1929 = vpop.f32.mrb[0].mxu0
        %1930 = vmatprep.mubr.f32.mxu0 0.0
        %1931 = vmatmul.mubr.f32.gmra.mrb[0].mxu0 %v1728
        %v1932 = vpop.f32.mrb[0].mxu0
        %v1933 = vadd.f32 %v1782, %v1932
        %v1934 = vpop.f32.mrb[0].mxu0
        %1935 = vmatprep.mubr.f32.mxu0 0.0
        %1936 = vmatmul.mubr.f32.gmra.mrb[0].mxu0 %v1729
        %v1937 = vpop.f32.mrb[0].mxu0
        %v1938 = vadd.f32 %v1783, %v1937
        %v1939 = vpop.f32.mrb[0].mxu0
        %1940 = vmatprep.mubr.f32.mxu0 0.0
        %1941 = vmatmul.mubr.f32.gmra.mrb[0].mxu0 %v1730
        %v1942 = vpop.f32.mrb[0].mxu0
        %v1943 = vadd.f32 %v1784, %v1942
        %v1944 = vpop.f32.mrb[0].mxu0
        %1945 = vmatprep.mubr.f32.mxu0 0.0
        %1946 = vmatmul.mubr.f32.gmra.mrb[0].mxu0 %v1731
        %v1947 = vpop.f32.mrb[0].mxu0
        %v1948 = vadd.f32 %v1785, %v1947
        %v1949 = vpop.f32.mrb[0].mxu0
        %1950 = vmatprep.mubr.f32.mxu0 0.0
        %1951 = vmatmul.mubr.f32.gmra.mrb[0].mxu0 %v1732
        %v1952 = vpop.f32.mrb[0].mxu0
        %v1953 = vadd.f32 %v1786, %v1952
        %v1954 = vpop.f32.mrb[0].mxu0
        %1955 = vmatprep.mubr.f32.mxu0 0.0
        %1956 = vmatmul.mubr.f32.gmra.mrb[0].mxu0 %v1733
        %v1957 = vpop.f32.mrb[0].mxu0
        %v1958 = vadd.f32 %v1787, %v1957
        %v1959 = vpop.f32.mrb[0].mxu0
        %1960 = vmatprep.mubr.f32.mxu0 0.0
        %1961 = vmatmul.mubr.f32.gmra.mrb[0].mxu0 %v1734
        %v1962 = vpop.f32.mrb[0].mxu0
        %v1963 = vadd.f32 %v1788, %v1962
        %v1964 = vpop.f32.mrb[0].mxu0
        %1965 = vdwg.mxu0
        %v1966 = vadd.f32 %v1716, %v1873
        %v1967 = vadd.f32 %v1717, %v1878
        %v1968 = vadd.f32 %v1718, %v1883
        %v1969 = vadd.f32 %v1719, %v1888
        %v1970 = vadd.f32 %v1720, %v1893
        %v1971 = vadd.f32 %v1721, %v1898
        %v1972 = vadd.f32 %v1722, %v1903
        %v1973 = vadd.f32 %v1723, %v1908
        %v1974 = vadd.f32 %v1724, %v1913
        %v1975 = vadd.f32 %v1725, %v1918
        %v1976 = vadd.f32 %v1726, %v1923
        %v1977 = vadd.f32 %v1727, %v1928
        %v1978 = vadd.f32 %v1728, %v1933
        %v1979 = vadd.f32 %v1729, %v1938
        %v1980 = vadd.f32 %v1730, %v1943
        %v1981 = vadd.f32 %v1731, %v1948
        %v1982 = vadd.f32 %v1732, %v1953
        %v1983 = vadd.f32 %v1733, %v1958
        %v1984 = vadd.f32 %v1734, %v1963
        %v1985 = vsub.f32 0.0, %v1966
        %v1986 = vsub.f32 0.0, %v1967
        %v1987 = vsub.f32 0.0, %v1968
        %v1988 = vsub.f32 0.0, %v1969
        %v1989 = vsub.f32 0.0, %v1970
        %v1990 = vsub.f32 0.0, %v1971
        %v1991 = vsub.f32 0.0, %v1972
        %v1992 = vsub.f32 0.0, %v1973
        %v1993 = vsub.f32 0.0, %v1974
        %v1994 = vsub.f32 0.0, %v1975
        %v1995 = vsub.f32 0.0, %v1976
        %v1996 = vsub.f32 0.0, %v1977
        %v1997 = vsub.f32 0.0, %v1978
        %v1998 = vsub.f32 0.0, %v1979
        %v1999 = vsub.f32 0.0, %v1980
        %v2000 = vsub.f32 0.0, %v1981
        %v2001 = vsub.f32 0.0, %v1982
        %v2002 = vsub.f32 0.0, %v1983
        %v2003 = vsub.f32 0.0, %v1984
        %v2004 = vmul.f32 %v1985, 1.442695
        %v2005 = vpow.pop %v2004
        %v2006 = vmul.f32 %v1986, 1.442695
        %v2007 = vpow.pop %v2006
        %v2008 = vmul.f32 %v1987, 1.442695
        %v2009 = vpow.pop %v2008
        %v2010 = vmul.f32 %v1988, 1.442695
        %v2011 = vpow.pop %v2010
        %v2012 = vmul.f32 %v1989, 1.442695
        %v2013 = vpow.pop %v2012
        %v2014 = vmul.f32 %v1990, 1.442695
        %v2015 = vpow.pop %v2014
        %v2016 = vmul.f32 %v1991, 1.442695
        %v2017 = vpow.pop %v2016
        %v2018 = vmul.f32 %v1992, 1.442695
        %v2019 = vpow.pop %v2018
        %v2020 = vmul.f32 %v1993, 1.442695
        %v2021 = vpow.pop %v2020
        %v2022 = vmul.f32 %v1994, 1.442695
        %v2023 = vpow.pop %v2022
        %v2024 = vmul.f32 %v1995, 1.442695
        %v2025 = vpow.pop %v2024
        %v2026 = vmul.f32 %v1996, 1.442695
        %v2027 = vpow.pop %v2026
        %v2028 = vmul.f32 %v1997, 1.442695
        %v2029 = vpow.pop %v2028
        %v2030 = vmul.f32 %v1998, 1.442695
        %v2031 = vpow.pop %v2030
        %v2032 = vmul.f32 %v1999, 1.442695
        %v2033 = vpow.pop %v2032
        %v2034 = vmul.f32 %v2000, 1.442695
        %v2035 = vpow.pop %v2034
        %v2036 = vmul.f32 %v2001, 1.442695
        %v2037 = vpow.pop %v2036
        %v2038 = vmul.f32 %v2002, 1.442695
        %v2039 = vpow.pop %v2038
        %v2040 = vmul.f32 %v2003, 1.442695
        %v2041 = vpow.pop %v2040
        %v2042 = vadd.f32 %v2005, 1.0
        %v2043 = vadd.f32 %v2007, 1.0
        %v2044 = vadd.f32 %v2009, 1.0
        %v2045 = vadd.f32 %v2011, 1.0
        %v2046 = vadd.f32 %v2013, 1.0
        %v2047 = vadd.f32 %v2015, 1.0
        %v2048 = vadd.f32 %v2017, 1.0
        %v2049 = vadd.f32 %v2019, 1.0
        %v2050 = vadd.f32 %v2021, 1.0
        %v2051 = vadd.f32 %v2023, 1.0
        %v2052 = vadd.f32 %v2025, 1.0
        %v2053 = vadd.f32 %v2027, 1.0
        %v2054 = vadd.f32 %v2029, 1.0
        %v2055 = vadd.f32 %v2031, 1.0
        %v2056 = vadd.f32 %v2033, 1.0
        %v2057 = vadd.f32 %v2035, 1.0
        %v2058 = vadd.f32 %v2037, 1.0
        %v2059 = vadd.f32 %v2039, 1.0
        %v2060 = vadd.f32 %v2041, 1.0
        %v2061 = vrcp.pop %v2042
        %v2062 = vrcp.pop %v2043
        %v2063 = vrcp.pop %v2044
        %v2064 = vrcp.pop %v2045
        %v2065 = vrcp.pop %v2046
        %v2066 = vrcp.pop %v2047
        %v2067 = vrcp.pop %v2048
        %v2068 = vrcp.pop %v2049
        %v2069 = vrcp.pop %v2050
        %v2070 = vrcp.pop %v2051
        %v2071 = vrcp.pop %v2052
        %v2072 = vrcp.pop %v2053
        %v2073 = vrcp.pop %v2054
        %v2074 = vrcp.pop %v2055
        %v2075 = vrcp.pop %v2056
        %v2076 = vrcp.pop %v2057
        %v2077 = vrcp.pop %v2058
        %v2078 = vrcp.pop %v2059
        %v2079 = vrcp.pop %v2060
        %v2080 = vmul.f32 %v1966, %v2061
        %v2081 = vmul.f32 %v1967, %v2062
        %v2082 = vmul.f32 %v1968, %v2063
        %v2083 = vmul.f32 %v1969, %v2064
        %v2084 = vmul.f32 %v1970, %v2065
        %v2085 = vmul.f32 %v1971, %v2066
        %v2086 = vmul.f32 %v1972, %v2067
        %v2087 = vmul.f32 %v1973, %v2068
        %v2088 = vmul.f32 %v1974, %v2069
        %v2089 = vmul.f32 %v1975, %v2070
        %v2090 = vmul.f32 %v1976, %v2071
        %v2091 = vmul.f32 %v1977, %v2072
        %v2092 = vmul.f32 %v1978, %v2073
        %v2093 = vmul.f32 %v1979, %v2074
        %v2094 = vmul.f32 %v1980, %v2075
        %v2095 = vmul.f32 %v1981, %v2076
        %v2096 = vmul.f32 %v1982, %v2077
        %v2097 = vmul.f32 %v1983, %v2078
        %v2098 = vmul.f32 %v1984, %v2079
        %s2099 = scalar_lea.vmem %s6, 3
        %v2100 = vld [vmem:[%s2099] sm:$0x1]
        %v2102 = vlaneseq
        %v2103 = vshrl.u32 %v2102, 7
        %v2104 = vsub.s32 0, %v2103
        %v2105 = vrot.slane %v2100, %v2104
        %v2107 = vmul.f32 %v529, %v2105
        %v2108 = vmul.f32 %v534, %v2105
        %v2109 = vmul.f32 %v539, %v2105
        %v2110 = vmul.f32 %v544, %v2105
        %v2111 = vmul.f32 %v549, %v2105
        %v2112 = vmul.f32 %v554, %v2105
        %v2113 = vmul.f32 %v559, %v2105
        %v2114 = vmul.f32 %v564, %v2105
        %v2115 = vmul.f32 %v569, %v2105
        %v2116 = vmul.f32 %v574, %v2105
        %v2117 = vmul.f32 %v579, %v2105
        %v2118 = vmul.f32 %v584, %v2105
        %v2119 = vmul.f32 %v589, %v2105
        %v2120 = vmul.f32 %v594, %v2105
        %v2121 = vmul.f32 %v599, %v2105
        %v2122 = vmul.f32 %v604, %v2105
        %v2123 = vmul.f32 %v609, %v2105
        %v2124 = vmul.f32 %v614, %v2105
        %v2125 = vmul.f32 %v619, %v2105
        %s2126 = scalar_lea.vmem [#allocation7], 3
        %v2127 = vld [vmem:[%s2126] sm:$0x1]
        %v2129 = vlaneseq
        %v2130 = vshrl.u32 %v2129, 7
        %v2131 = vsub.s32 0, %v2130
        %v2132 = vrot.slane %v2127, %v2131
        %v2134 = vadd.f32 %v2107, %v2132
        %v2135 = vadd.f32 %v2108, %v2132
        %v2136 = vadd.f32 %v2109, %v2132
        %v2137 = vadd.f32 %v2110, %v2132
        %v2138 = vadd.f32 %v2111, %v2132
        %v2139 = vadd.f32 %v2112, %v2132
        %v2140 = vadd.f32 %v2113, %v2132
        %v2141 = vadd.f32 %v2114, %v2132
        %v2142 = vadd.f32 %v2115, %v2132
        %v2143 = vadd.f32 %v2116, %v2132
        %v2144 = vadd.f32 %v2117, %v2132
        %v2145 = vadd.f32 %v2118, %v2132
        %v2146 = vadd.f32 %v2119, %v2132
        %v2147 = vadd.f32 %v2120, %v2132
        %v2148 = vadd.f32 %v2121, %v2132
        %v2149 = vadd.f32 %v2122, %v2132
        %v2150 = vadd.f32 %v2123, %v2132
        %v2151 = vadd.f32 %v2124, %v2132
        %v2152 = vadd.f32 %v2125, %v2132
        %s2153 = scalar_lea.vmem %s5, 384
        %v2154 = vld [vmem:[%s2153] sm:$0xff]
        %v2155 = vld [vmem:[%s2153 + $0x8] sm:$0xff]
        %v2156 = vld [vmem:[%s2153 + $0x10] sm:$0xff]
        %v2157 = vld [vmem:[%s2153 + $0x18] sm:$0xff]
        %v2158 = vld [vmem:[%s2153 + $0x20] sm:$0xff]
        %v2159 = vld [vmem:[%s2153 + $0x28] sm:$0xff]
        %v2160 = vld [vmem:[%s2153 + $0x30] sm:$0xff]
        %v2161 = vld [vmem:[%s2153 + $0x38] sm:$0xff]
        %v2162 = vld [vmem:[%s2153 + $0x40] sm:$0xff]
        %v2163 = vld [vmem:[%s2153 + $0x48] sm:$0xff]
        %v2164 = vld [vmem:[%s2153 + $0x50] sm:$0xff]
        %v2165 = vld [vmem:[%s2153 + $0x58] sm:$0xff]
        %v2166 = vld [vmem:[%s2153 + $0x60] sm:$0xff]
        %v2167 = vld [vmem:[%s2153 + $0x68] sm:$0xff]
        %v2168 = vld [vmem:[%s2153 + $0x70] sm:$0xff]
        %v2169 = vld [vmem:[%s2153 + $0x78] sm:$0xff]
        %2170 = vmatprep.subr.mxu0 0.0
        %2171 = vmatpush1.msra.mxu0 %v2154
        %2172 = vmatprep.subr.mxu0 0.0
        %2173 = vmatpush1.msra.mxu0 %v2155
        %2174 = vmatprep.subr.mxu0 0.0
        %2175 = vmatpush1.msra.mxu0 %v2156
        %2176 = vmatprep.subr.mxu0 0.0
        %2177 = vmatpush1.msra.mxu0 %v2157
        %2178 = vmatprep.subr.mxu0 0.0
        %2179 = vmatpush1.msra.mxu0 %v2158
        %2180 = vmatprep.subr.mxu0 0.0
        %2181 = vmatpush1.msra.mxu0 %v2159
        %2182 = vmatprep.subr.mxu0 0.0
        %2183 = vmatpush1.msra.mxu0 %v2160
        %2184 = vmatprep.subr.mxu0 0.0
        %2185 = vmatpush1.msra.mxu0 %v2161
        %2186 = vmatprep.subr.mxu0 0.0
        %2187 = vmatpush1.msra.mxu0 %v2162
        %2188 = vmatprep.subr.mxu0 0.0
        %2189 = vmatpush1.msra.mxu0 %v2163
        %2190 = vmatprep.subr.mxu0 0.0
        %2191 = vmatpush1.msra.mxu0 %v2164
        %2192 = vmatprep.subr.mxu0 0.0
        %2193 = vmatpush1.msra.mxu0 %v2165
        %2194 = vmatprep.subr.mxu0 0.0
        %2195 = vmatpush1.msra.mxu0 %v2166
        %2196 = vmatprep.subr.mxu0 0.0
        %2197 = vmatpush1.msra.mxu0 %v2167
        %2198 = vmatprep.subr.mxu0 0.0
        %2199 = vmatpush1.msra.mxu0 %v2168
        %2200 = vmatprep.subr.mxu0 0.0
        %2201 = vmatpush1.msra.mxu0 %v2169
        %2202 = vmatprep.subr.mxu0 0.0
        %2203 = vmatpush1.msra.mxu0 0.0
        %2204 = vmatprep.subr.mxu0 0.0
        %2205 = vmatpush1.msra.mxu0 0.0
        %2206 = vmatprep.subr.mxu0 0.0
        %2207 = vmatpush1.msra.mxu0 0.0
        %2208 = vmatprep.subr.mxu0 0.0
        %2209 = vmatpush1.msra.mxu0 0.0
        %2210 = vmatprep.subr.mxu0 0.0
        %2211 = vmatpush1.msra.mxu0 0.0
        %2212 = vmatprep.subr.mxu0 0.0
        %2213 = vmatpush1.msra.mxu0 0.0
        %2214 = vmatprep.subr.mxu0 0.0
        %2215 = vmatpush1.msra.mxu0 0.0
        %2216 = vmatprep.subr.mxu0 0.0
        %2217 = vmatpush1.msra.mxu0 0.0
        %2218 = vmatprep.subr.mxu0 0.0
        %2219 = vmatpush1.msra.mxu0 0.0
        %2220 = vmatprep.subr.mxu0 0.0
        %2221 = vmatpush1.msra.mxu0 0.0
        %2222 = vmatprep.subr.mxu0 0.0
        %2223 = vmatpush1.msra.mxu0 0.0
        %2224 = vmatprep.subr.mxu0 0.0
        %2225 = vmatpush1.msra.mxu0 0.0
        %2226 = vmatprep.subr.mxu0 0.0
        %2227 = vmatpush1.msra.mxu0 0.0
        %2228 = vmatprep.subr.mxu0 0.0
        %2229 = vmatpush1.msra.mxu0 0.0
        %2230 = vmatprep.subr.mxu0 0.0
        %2231 = vmatpush1.msra.mxu0 0.0
        %2232 = vmatprep.subr.mxu0 0.0
        %2233 = vmatpush1.msra.mxu0 0.0
        %2234 = vmatprep.mubr.f32.mxu0 0.0
        %2235 = vmatmul.mubr.f32.gmra.mrb[0].mxu0 %v2080
        %v2236 = vpop.f32.mrb[0].mxu0
        %v2237 = vadd.f32 %v2134, %v2236
        %v2238 = vpop.f32.mrb[0].mxu0
        %2239 = vmatprep.mubr.f32.mxu0 0.0
        %2240 = vmatmul.mubr.f32.gmra.mrb[0].mxu0 %v2081
        %v2241 = vpop.f32.mrb[0].mxu0
        %v2242 = vadd.f32 %v2135, %v2241
        %v2243 = vpop.f32.mrb[0].mxu0
        %2244 = vmatprep.mubr.f32.mxu0 0.0
        %2245 = vmatmul.mubr.f32.gmra.mrb[0].mxu0 %v2082
        %v2246 = vpop.f32.mrb[0].mxu0
        %v2247 = vadd.f32 %v2136, %v2246
        %v2248 = vpop.f32.mrb[0].mxu0
        %2249 = vmatprep.mubr.f32.mxu0 0.0
        %2250 = vmatmul.mubr.f32.gmra.mrb[0].mxu0 %v2083
        %v2251 = vpop.f32.mrb[0].mxu0
        %v2252 = vadd.f32 %v2137, %v2251
        %v2253 = vpop.f32.mrb[0].mxu0
        %2254 = vmatprep.mubr.f32.mxu0 0.0
        %2255 = vmatmul.mubr.f32.gmra.mrb[0].mxu0 %v2084
        %v2256 = vpop.f32.mrb[0].mxu0
        %v2257 = vadd.f32 %v2138, %v2256
        %v2258 = vpop.f32.mrb[0].mxu0
        %2259 = vmatprep.mubr.f32.mxu0 0.0
        %2260 = vmatmul.mubr.f32.gmra.mrb[0].mxu0 %v2085
        %v2261 = vpop.f32.mrb[0].mxu0
        %v2262 = vadd.f32 %v2139, %v2261
        %v2263 = vpop.f32.mrb[0].mxu0
        %2264 = vmatprep.mubr.f32.mxu0 0.0
        %2265 = vmatmul.mubr.f32.gmra.mrb[0].mxu0 %v2086
        %v2266 = vpop.f32.mrb[0].mxu0
        %v2267 = vadd.f32 %v2140, %v2266
        %v2268 = vpop.f32.mrb[0].mxu0
        %2269 = vmatprep.mubr.f32.mxu0 0.0
        %2270 = vmatmul.mubr.f32.gmra.mrb[0].mxu0 %v2087
        %v2271 = vpop.f32.mrb[0].mxu0
        %v2272 = vadd.f32 %v2141, %v2271
        %v2273 = vpop.f32.mrb[0].mxu0
        %2274 = vmatprep.mubr.f32.mxu0 0.0
        %2275 = vmatmul.mubr.f32.gmra.mrb[0].mxu0 %v2088
        %v2276 = vpop.f32.mrb[0].mxu0
        %v2277 = vadd.f32 %v2142, %v2276
        %v2278 = vpop.f32.mrb[0].mxu0
        %2279 = vmatprep.mubr.f32.mxu0 0.0
        %2280 = vmatmul.mubr.f32.gmra.mrb[0].mxu0 %v2089
        %v2281 = vpop.f32.mrb[0].mxu0
        %v2282 = vadd.f32 %v2143, %v2281
        %v2283 = vpop.f32.mrb[0].mxu0
        %2284 = vmatprep.mubr.f32.mxu0 0.0
        %2285 = vmatmul.mubr.f32.gmra.mrb[0].mxu0 %v2090
        %v2286 = vpop.f32.mrb[0].mxu0
        %v2287 = vadd.f32 %v2144, %v2286
        %v2288 = vpop.f32.mrb[0].mxu0
        %2289 = vmatprep.mubr.f32.mxu0 0.0
        %2290 = vmatmul.mubr.f32.gmra.mrb[0].mxu0 %v2091
        %v2291 = vpop.f32.mrb[0].mxu0
        %v2292 = vadd.f32 %v2145, %v2291
        %v2293 = vpop.f32.mrb[0].mxu0
        %2294 = vmatprep.mubr.f32.mxu0 0.0
        %2295 = vmatmul.mubr.f32.gmra.mrb[0].mxu0 %v2092
        %v2296 = vpop.f32.mrb[0].mxu0
        %v2297 = vadd.f32 %v2146, %v2296
        %v2298 = vpop.f32.mrb[0].mxu0
        %2299 = vmatprep.mubr.f32.mxu0 0.0
        %2300 = vmatmul.mubr.f32.gmra.mrb[0].mxu0 %v2093
        %v2301 = vpop.f32.mrb[0].mxu0
        %v2302 = vadd.f32 %v2147, %v2301
        %v2303 = vpop.f32.mrb[0].mxu0
        %2304 = vmatprep.mubr.f32.mxu0 0.0
        %2305 = vmatmul.mubr.f32.gmra.mrb[0].mxu0 %v2094
        %v2306 = vpop.f32.mrb[0].mxu0
        %v2307 = vadd.f32 %v2148, %v2306
        %v2308 = vpop.f32.mrb[0].mxu0
        %2309 = vmatprep.mubr.f32.mxu0 0.0
        %2310 = vmatmul.mubr.f32.gmra.mrb[0].mxu0 %v2095
        %v2311 = vpop.f32.mrb[0].mxu0
        %v2312 = vadd.f32 %v2149, %v2311
        %v2313 = vpop.f32.mrb[0].mxu0
        %2314 = vmatprep.mubr.f32.mxu0 0.0
        %2315 = vmatmul.mubr.f32.gmra.mrb[0].mxu0 %v2096
        %v2316 = vpop.f32.mrb[0].mxu0
        %v2317 = vadd.f32 %v2150, %v2316
        %v2318 = vpop.f32.mrb[0].mxu0
        %2319 = vmatprep.mubr.f32.mxu0 0.0
        %2320 = vmatmul.mubr.f32.gmra.mrb[0].mxu0 %v2097
        %v2321 = vpop.f32.mrb[0].mxu0
        %v2322 = vadd.f32 %v2151, %v2321
        %v2323 = vpop.f32.mrb[0].mxu0
        %2324 = vmatprep.mubr.f32.mxu0 0.0
        %2325 = vmatmul.mubr.f32.gmra.mrb[0].mxu0 %v2098
        %v2326 = vpop.f32.mrb[0].mxu0
        %v2327 = vadd.f32 %v2152, %v2326
        %v2328 = vpop.f32.mrb[0].mxu0
        %2329 = vdwg.mxu0
        %v2330 = vadd.f32 %v2080, %v2237
        %v2331 = vadd.f32 %v2081, %v2242
        %v2332 = vadd.f32 %v2082, %v2247
        %v2333 = vadd.f32 %v2083, %v2252
        %v2334 = vadd.f32 %v2084, %v2257
        %v2335 = vadd.f32 %v2085, %v2262
        %v2336 = vadd.f32 %v2086, %v2267
        %v2337 = vadd.f32 %v2087, %v2272
        %v2338 = vadd.f32 %v2088, %v2277
        %v2339 = vadd.f32 %v2089, %v2282
        %v2340 = vadd.f32 %v2090, %v2287
        %v2341 = vadd.f32 %v2091, %v2292
        %v2342 = vadd.f32 %v2092, %v2297
        %v2343 = vadd.f32 %v2093, %v2302
        %v2344 = vadd.f32 %v2094, %v2307
        %v2345 = vadd.f32 %v2095, %v2312
        %v2346 = vadd.f32 %v2096, %v2317
        %v2347 = vadd.f32 %v2097, %v2322
        %v2348 = vadd.f32 %v2098, %v2327
        %v2349 = vsub.f32 0.0, %v2330
        %v2350 = vsub.f32 0.0, %v2331
        %v2351 = vsub.f32 0.0, %v2332
        %v2352 = vsub.f32 0.0, %v2333
        %v2353 = vsub.f32 0.0, %v2334
        %v2354 = vsub.f32 0.0, %v2335
        %v2355 = vsub.f32 0.0, %v2336
        %v2356 = vsub.f32 0.0, %v2337
        %v2357 = vsub.f32 0.0, %v2338
        %v2358 = vsub.f32 0.0, %v2339
        %v2359 = vsub.f32 0.0, %v2340
        %v2360 = vsub.f32 0.0, %v2341
        %v2361 = vsub.f32 0.0, %v2342
        %v2362 = vsub.f32 0.0, %v2343
        %v2363 = vsub.f32 0.0, %v2344
        %v2364 = vsub.f32 0.0, %v2345
        %v2365 = vsub.f32 0.0, %v2346
        %v2366 = vsub.f32 0.0, %v2347
        %v2367 = vsub.f32 0.0, %v2348
        %v2368 = vmul.f32 %v2349, 1.442695
        %v2369 = vpow.pop %v2368
        %v2370 = vmul.f32 %v2350, 1.442695
        %v2371 = vpow.pop %v2370
        %v2372 = vmul.f32 %v2351, 1.442695
        %v2373 = vpow.pop %v2372
        %v2374 = vmul.f32 %v2352, 1.442695
        %v2375 = vpow.pop %v2374
        %v2376 = vmul.f32 %v2353, 1.442695
        %v2377 = vpow.pop %v2376
        %v2378 = vmul.f32 %v2354, 1.442695
        %v2379 = vpow.pop %v2378
        %v2380 = vmul.f32 %v2355, 1.442695
        %v2381 = vpow.pop %v2380
        %v2382 = vmul.f32 %v2356, 1.442695
        %v2383 = vpow.pop %v2382
        %v2384 = vmul.f32 %v2357, 1.442695
        %v2385 = vpow.pop %v2384
        %v2386 = vmul.f32 %v2358, 1.442695
        %v2387 = vpow.pop %v2386
        %v2388 = vmul.f32 %v2359, 1.442695
        %v2389 = vpow.pop %v2388
        %v2390 = vmul.f32 %v2360, 1.442695
        %v2391 = vpow.pop %v2390
        %v2392 = vmul.f32 %v2361, 1.442695
        %v2393 = vpow.pop %v2392
        %v2394 = vmul.f32 %v2362, 1.442695
        %v2395 = vpow.pop %v2394
        %v2396 = vmul.f32 %v2363, 1.442695
        %v2397 = vpow.pop %v2396
        %v2398 = vmul.f32 %v2364, 1.442695
        %v2399 = vpow.pop %v2398
        %v2400 = vmul.f32 %v2365, 1.442695
        %v2401 = vpow.pop %v2400
        %v2402 = vmul.f32 %v2366, 1.442695
        %v2403 = vpow.pop %v2402
        %v2404 = vmul.f32 %v2367, 1.442695
        %v2405 = vpow.pop %v2404
        %v2406 = vadd.f32 %v2369, 1.0
        %v2407 = vadd.f32 %v2371, 1.0
        %v2408 = vadd.f32 %v2373, 1.0
        %v2409 = vadd.f32 %v2375, 1.0
        %v2410 = vadd.f32 %v2377, 1.0
        %v2411 = vadd.f32 %v2379, 1.0
        %v2412 = vadd.f32 %v2381, 1.0
        %v2413 = vadd.f32 %v2383, 1.0
        %v2414 = vadd.f32 %v2385, 1.0
        %v2415 = vadd.f32 %v2387, 1.0
        %v2416 = vadd.f32 %v2389, 1.0
        %v2417 = vadd.f32 %v2391, 1.0
        %v2418 = vadd.f32 %v2393, 1.0
        %v2419 = vadd.f32 %v2395, 1.0
        %v2420 = vadd.f32 %v2397, 1.0
        %v2421 = vadd.f32 %v2399, 1.0
        %v2422 = vadd.f32 %v2401, 1.0
        %v2423 = vadd.f32 %v2403, 1.0
        %v2424 = vadd.f32 %v2405, 1.0
        %v2425 = vrcp.pop %v2406
        %v2426 = vrcp.pop %v2407
        %v2427 = vrcp.pop %v2408
        %v2428 = vrcp.pop %v2409
        %v2429 = vrcp.pop %v2410
        %v2430 = vrcp.pop %v2411
        %v2431 = vrcp.pop %v2412
        %v2432 = vrcp.pop %v2413
        %v2433 = vrcp.pop %v2414
        %v2434 = vrcp.pop %v2415
        %v2435 = vrcp.pop %v2416
        %v2436 = vrcp.pop %v2417
        %v2437 = vrcp.pop %v2418
        %v2438 = vrcp.pop %v2419
        %v2439 = vrcp.pop %v2420
        %v2440 = vrcp.pop %v2421
        %v2441 = vrcp.pop %v2422
        %v2442 = vrcp.pop %v2423
        %v2443 = vrcp.pop %v2424
        %v2444 = vmul.f32 %v2330, %v2425
        %v2445 = vmul.f32 %v2331, %v2426
        %v2446 = vmul.f32 %v2332, %v2427
        %v2447 = vmul.f32 %v2333, %v2428
        %v2448 = vmul.f32 %v2334, %v2429
        %v2449 = vmul.f32 %v2335, %v2430
        %v2450 = vmul.f32 %v2336, %v2431
        %v2451 = vmul.f32 %v2337, %v2432
        %v2452 = vmul.f32 %v2338, %v2433
        %v2453 = vmul.f32 %v2339, %v2434
        %v2454 = vmul.f32 %v2340, %v2435
        %v2455 = vmul.f32 %v2341, %v2436
        %v2456 = vmul.f32 %v2342, %v2437
        %v2457 = vmul.f32 %v2343, %v2438
        %v2458 = vmul.f32 %v2344, %v2439
        %v2459 = vmul.f32 %v2345, %v2440
        %v2460 = vmul.f32 %v2346, %v2441
        %v2461 = vmul.f32 %v2347, %v2442
        %v2462 = vmul.f32 %v2348, %v2443
        %v2463 = vld [vmem:[%s8] sm:$0xff]
        %v2464 = vld [vmem:[%s8 + $0x8] sm:$0xff]
        %v2465 = vld [vmem:[%s8 + $0x10] sm:$0xff]
        %v2466 = vld [vmem:[%s8 + $0x18] sm:$0xff]
        %v2467 = vld [vmem:[%s8 + $0x20] sm:$0xff]
        %v2468 = vld [vmem:[%s8 + $0x28] sm:$0xff]
        %v2469 = vld [vmem:[%s8 + $0x30] sm:$0xff]
        %v2470 = vld [vmem:[%s8 + $0x38] sm:$0xff]
        %v2471 = vld [vmem:[%s8 + $0x40] sm:$0xff]
        %v2472 = vld [vmem:[%s8 + $0x48] sm:$0xff]
        %v2473 = vld [vmem:[%s8 + $0x50] sm:$0xff]
        %v2474 = vld [vmem:[%s8 + $0x58] sm:$0xff]
        %v2475 = vld [vmem:[%s8 + $0x60] sm:$0xff]
        %v2476 = vld [vmem:[%s8 + $0x68] sm:$0xff]
        %v2477 = vld [vmem:[%s8 + $0x70] sm:$0xff]
        %v2478 = vld [vmem:[%s8 + $0x78] sm:$0xff]
        %v2479 = vld [vmem:[%s9] sm:$0x1]
        %v2481 = vlaneseq
        %v2482 = vshrl.u32 %v2481, 7
        %v2483 = vsub.s32 0, %v2482
        %v2484 = vrot.slane %v2479, %v2483
        %v2486 = vmul.f32 %v529, %v2484
        %v2487 = vmul.f32 %v534, %v2484
        %v2488 = vmul.f32 %v539, %v2484
        %v2489 = vmul.f32 %v544, %v2484
        %v2490 = vmul.f32 %v549, %v2484
        %v2491 = vmul.f32 %v554, %v2484
        %v2492 = vmul.f32 %v559, %v2484
        %v2493 = vmul.f32 %v564, %v2484
        %v2494 = vmul.f32 %v569, %v2484
        %v2495 = vmul.f32 %v574, %v2484
        %v2496 = vmul.f32 %v579, %v2484
        %v2497 = vmul.f32 %v584, %v2484
        %v2498 = vmul.f32 %v589, %v2484
        %v2499 = vmul.f32 %v594, %v2484
        %v2500 = vmul.f32 %v599, %v2484
        %v2501 = vmul.f32 %v604, %v2484
        %v2502 = vmul.f32 %v609, %v2484
        %v2503 = vmul.f32 %v614, %v2484
        %v2504 = vmul.f32 %v619, %v2484
        %v2505 = vld [vmem:[%s10] sm:$0x1]
        %v2507 = vlaneseq
        %v2508 = vshrl.u32 %v2507, 7
        %v2509 = vsub.s32 0, %v2508
        %v2510 = vrot.slane %v2505, %v2509
        %v2512 = vadd.f32 %v2486, %v2510
        %v2513 = vadd.f32 %v2487, %v2510
        %v2514 = vadd.f32 %v2488, %v2510
        %v2515 = vadd.f32 %v2489, %v2510
        %v2516 = vadd.f32 %v2490, %v2510
        %v2517 = vadd.f32 %v2491, %v2510
        %v2518 = vadd.f32 %v2492, %v2510
        %v2519 = vadd.f32 %v2493, %v2510
        %v2520 = vadd.f32 %v2494, %v2510
        %v2521 = vadd.f32 %v2495, %v2510
        %v2522 = vadd.f32 %v2496, %v2510
        %v2523 = vadd.f32 %v2497, %v2510
        %v2524 = vadd.f32 %v2498, %v2510
        %v2525 = vadd.f32 %v2499, %v2510
        %v2526 = vadd.f32 %v2500, %v2510
        %v2527 = vadd.f32 %v2501, %v2510
        %v2528 = vadd.f32 %v2502, %v2510
        %v2529 = vadd.f32 %v2503, %v2510
        %v2530 = vadd.f32 %v2504, %v2510
        %2531 = vmatprep.subr.mxu0 0.0
        %2532 = vmatpush1.msra.mxu0 %v2463
        %2533 = vmatprep.subr.mxu0 0.0
        %2534 = vmatpush1.msra.mxu0 %v2464
        %2535 = vmatprep.subr.mxu0 0.0
        %2536 = vmatpush1.msra.mxu0 %v2465
        %2537 = vmatprep.subr.mxu0 0.0
        %2538 = vmatpush1.msra.mxu0 %v2466
        %2539 = vmatprep.subr.mxu0 0.0
        %2540 = vmatpush1.msra.mxu0 %v2467
        %2541 = vmatprep.subr.mxu0 0.0
        %2542 = vmatpush1.msra.mxu0 %v2468
        %2543 = vmatprep.subr.mxu0 0.0
        %2544 = vmatpush1.msra.mxu0 %v2469
        %2545 = vmatprep.subr.mxu0 0.0
        %2546 = vmatpush1.msra.mxu0 %v2470
        %2547 = vmatprep.subr.mxu0 0.0
        %2548 = vmatpush1.msra.mxu0 %v2471
        %2549 = vmatprep.subr.mxu0 0.0
        %2550 = vmatpush1.msra.mxu0 %v2472
        %2551 = vmatprep.subr.mxu0 0.0
        %2552 = vmatpush1.msra.mxu0 %v2473
        %2553 = vmatprep.subr.mxu0 0.0
        %2554 = vmatpush1.msra.mxu0 %v2474
        %2555 = vmatprep.subr.mxu0 0.0
        %2556 = vmatpush1.msra.mxu0 %v2475
        %2557 = vmatprep.subr.mxu0 0.0
        %2558 = vmatpush1.msra.mxu0 %v2476
        %2559 = vmatprep.subr.mxu0 0.0
        %2560 = vmatpush1.msra.mxu0 %v2477
        %2561 = vmatprep.subr.mxu0 0.0
        %2562 = vmatpush1.msra.mxu0 %v2478
        %2563 = vmatprep.subr.mxu0 0.0
        %2564 = vmatpush1.msra.mxu0 0.0
        %2565 = vmatprep.subr.mxu0 0.0
        %2566 = vmatpush1.msra.mxu0 0.0
        %2567 = vmatprep.subr.mxu0 0.0
        %2568 = vmatpush1.msra.mxu0 0.0
        %2569 = vmatprep.subr.mxu0 0.0
        %2570 = vmatpush1.msra.mxu0 0.0
        %2571 = vmatprep.subr.mxu0 0.0
        %2572 = vmatpush1.msra.mxu0 0.0
        %2573 = vmatprep.subr.mxu0 0.0
        %2574 = vmatpush1.msra.mxu0 0.0
        %2575 = vmatprep.subr.mxu0 0.0
        %2576 = vmatpush1.msra.mxu0 0.0
        %2577 = vmatprep.subr.mxu0 0.0
        %2578 = vmatpush1.msra.mxu0 0.0
        %2579 = vmatprep.subr.mxu0 0.0
        %2580 = vmatpush1.msra.mxu0 0.0
        %2581 = vmatprep.subr.mxu0 0.0
        %2582 = vmatpush1.msra.mxu0 0.0
        %2583 = vmatprep.subr.mxu0 0.0
        %2584 = vmatpush1.msra.mxu0 0.0
        %2585 = vmatprep.subr.mxu0 0.0
        %2586 = vmatpush1.msra.mxu0 0.0
        %2587 = vmatprep.subr.mxu0 0.0
        %2588 = vmatpush1.msra.mxu0 0.0
        %2589 = vmatprep.subr.mxu0 0.0
        %2590 = vmatpush1.msra.mxu0 0.0
        %2591 = vmatprep.subr.mxu0 0.0
        %2592 = vmatpush1.msra.mxu0 0.0
        %2593 = vmatprep.subr.mxu0 0.0
        %2594 = vmatpush1.msra.mxu0 0.0
        %2595 = vmatprep.mubr.f32.mxu0 0.0
        %2596 = vmatmul.mubr.f32.gmra.mrb[0].mxu0 %v2444
        %v2597 = vpop.f32.mrb[0].mxu0
        %v2598 = vadd.f32 %v2512, %v2597
        %v2599 = vpop.f32.mrb[0].mxu0
        %2600 = vmatprep.mubr.f32.mxu0 0.0
        %2601 = vmatmul.mubr.f32.gmra.mrb[0].mxu0 %v2445
        %v2602 = vpop.f32.mrb[0].mxu0
        %v2603 = vadd.f32 %v2513, %v2602
        %v2604 = vpop.f32.mrb[0].mxu0
        %2605 = vmatprep.mubr.f32.mxu0 0.0
        %2606 = vmatmul.mubr.f32.gmra.mrb[0].mxu0 %v2446
        %v2607 = vpop.f32.mrb[0].mxu0
        %v2608 = vadd.f32 %v2514, %v2607
        %v2609 = vpop.f32.mrb[0].mxu0
        %2610 = vmatprep.mubr.f32.mxu0 0.0
        %2611 = vmatmul.mubr.f32.gmra.mrb[0].mxu0 %v2447
        %v2612 = vpop.f32.mrb[0].mxu0
        %v2613 = vadd.f32 %v2515, %v2612
        %v2614 = vpop.f32.mrb[0].mxu0
        %2615 = vmatprep.mubr.f32.mxu0 0.0
        %2616 = vmatmul.mubr.f32.gmra.mrb[0].mxu0 %v2448
        %v2617 = vpop.f32.mrb[0].mxu0
        %v2618 = vadd.f32 %v2516, %v2617
        %v2619 = vpop.f32.mrb[0].mxu0
        %2620 = vmatprep.mubr.f32.mxu0 0.0
        %2621 = vmatmul.mubr.f32.gmra.mrb[0].mxu0 %v2449
        %v2622 = vpop.f32.mrb[0].mxu0
        %v2623 = vadd.f32 %v2517, %v2622
        %v2624 = vpop.f32.mrb[0].mxu0
        %2625 = vmatprep.mubr.f32.mxu0 0.0
        %2626 = vmatmul.mubr.f32.gmra.mrb[0].mxu0 %v2450
        %v2627 = vpop.f32.mrb[0].mxu0
        %v2628 = vadd.f32 %v2518, %v2627
        %v2629 = vpop.f32.mrb[0].mxu0
        %2630 = vmatprep.mubr.f32.mxu0 0.0
        %2631 = vmatmul.mubr.f32.gmra.mrb[0].mxu0 %v2451
        %v2632 = vpop.f32.mrb[0].mxu0
        %v2633 = vadd.f32 %v2519, %v2632
        %v2634 = vpop.f32.mrb[0].mxu0
        %2635 = vmatprep.mubr.f32.mxu0 0.0
        %2636 = vmatmul.mubr.f32.gmra.mrb[0].mxu0 %v2452
        %v2637 = vpop.f32.mrb[0].mxu0
        %v2638 = vadd.f32 %v2520, %v2637
        %v2639 = vpop.f32.mrb[0].mxu0
        %2640 = vmatprep.mubr.f32.mxu0 0.0
        %2641 = vmatmul.mubr.f32.gmra.mrb[0].mxu0 %v2453
        %v2642 = vpop.f32.mrb[0].mxu0
        %v2643 = vadd.f32 %v2521, %v2642
        %v2644 = vpop.f32.mrb[0].mxu0
        %2645 = vmatprep.mubr.f32.mxu0 0.0
        %2646 = vmatmul.mubr.f32.gmra.mrb[0].mxu0 %v2454
        %v2647 = vpop.f32.mrb[0].mxu0
        %v2648 = vadd.f32 %v2522, %v2647
        %v2649 = vpop.f32.mrb[0].mxu0
        %2650 = vmatprep.mubr.f32.mxu0 0.0
        %2651 = vmatmul.mubr.f32.gmra.mrb[0].mxu0 %v2455
        %v2652 = vpop.f32.mrb[0].mxu0
        %v2653 = vadd.f32 %v2523, %v2652
        %v2654 = vpop.f32.mrb[0].mxu0
        %2655 = vmatprep.mubr.f32.mxu0 0.0
        %2656 = vmatmul.mubr.f32.gmra.mrb[0].mxu0 %v2456
        %v2657 = vpop.f32.mrb[0].mxu0
        %v2658 = vadd.f32 %v2524, %v2657
        %v2659 = vpop.f32.mrb[0].mxu0
        %2660 = vmatprep.mubr.f32.mxu0 0.0
        %2661 = vmatmul.mubr.f32.gmra.mrb[0].mxu0 %v2457
        %v2662 = vpop.f32.mrb[0].mxu0
        %v2663 = vadd.f32 %v2525, %v2662
        %v2664 = vpop.f32.mrb[0].mxu0
        %2665 = vmatprep.mubr.f32.mxu0 0.0
        %2666 = vmatmul.mubr.f32.gmra.mrb[0].mxu0 %v2458
        %v2667 = vpop.f32.mrb[0].mxu0
        %v2668 = vadd.f32 %v2526, %v2667
        %v2669 = vpop.f32.mrb[0].mxu0
        %2670 = vmatprep.mubr.f32.mxu0 0.0
        %2671 = vmatmul.mubr.f32.gmra.mrb[0].mxu0 %v2459
        %v2672 = vpop.f32.mrb[0].mxu0
        %v2673 = vadd.f32 %v2527, %v2672
        %v2674 = vpop.f32.mrb[0].mxu0
        %2675 = vmatprep.mubr.f32.mxu0 0.0
        %2676 = vmatmul.mubr.f32.gmra.mrb[0].mxu0 %v2460
        %v2677 = vpop.f32.mrb[0].mxu0
        %v2678 = vadd.f32 %v2528, %v2677
        %v2679 = vpop.f32.mrb[0].mxu0
        %2680 = vmatprep.mubr.f32.mxu0 0.0
        %2681 = vmatmul.mubr.f32.gmra.mrb[0].mxu0 %v2461
        %v2682 = vpop.f32.mrb[0].mxu0
        %v2683 = vadd.f32 %v2529, %v2682
        %v2684 = vpop.f32.mrb[0].mxu0
        %2685 = vmatprep.mubr.f32.mxu0 0.0
        %2686 = vmatmul.mubr.f32.gmra.mrb[0].mxu0 %v2462
        %v2687 = vpop.f32.mrb[0].mxu0
        %v2688 = vadd.f32 %v2530, %v2687
        %v2689 = vpop.f32.mrb[0].mxu0
        %2690 = vdwg.mxu0
        %2691 = vst [vmem:[%s436] sm:$0xff] %v2598
        %2692 = vst [vmem:[%s436 + $0x8] sm:$0xff] %v2603
        %2693 = vst [vmem:[%s436 + $0x10] sm:$0xff] %v2608
        %2694 = vst [vmem:[%s436 + $0x18] sm:$0xff] %v2613
        %2695 = vst [vmem:[%s436 + $0x20] sm:$0xff] %v2618
        %2696 = vst [vmem:[%s436 + $0x28] sm:$0xff] %v2623
        %2697 = vst [vmem:[%s436 + $0x30] sm:$0xff] %v2628
        %2698 = vst [vmem:[%s436 + $0x38] sm:$0xff] %v2633
        %2699 = vst [vmem:[%s436 + $0x40] sm:$0xff] %v2638
        %2700 = vst [vmem:[%s436 + $0x48] sm:$0xff] %v2643
        %2701 = vst [vmem:[%s436 + $0x50] sm:$0xff] %v2648
        %2702 = vst [vmem:[%s436 + $0x58] sm:$0xff] %v2653
        %2703 = vst [vmem:[%s436 + $0x60] sm:$0xff] %v2658
        %2704 = vst [vmem:[%s436 + $0x68] sm:$0xff] %v2663
        %2705 = vst [vmem:[%s436 + $0x70] sm:$0xff] %v2668
        %2706 = vst [vmem:[%s436 + $0x78] sm:$0xff] %v2673
        %2707 = vst [vmem:[%s436 + $0x80] sm:$0xff] %v2678
        %2708 = vst [vmem:[%s436 + $0x88] sm:$0xff] %v2683
        %2709 = vst [vmem:[%s436 + $0x90] sm:$0xff] %v2688
        %s2710 = sand.u32 %s276, 1
        %s2711 = scalar_lea.sflag [#allocation4], %s2710
        %s2712 = sand.u32 %s276, 1
        %s2713 = smul.addr %s2712, 152
        %s2714 = scalar_lea.vmem [#allocation8], %s2713
        // Predicated region
        $region77: #{tpu_custom_call.1} parent=63 // pred_check
          %p2715 = pneg %p286
        $region78: #{tpu_custom_call.1} parent=63 // pred_check_branch
          %2717 = sbr.rel (%p2715) target = $region80
        $region79: #{tpu_custom_call.1} parent=63 // pred_region
          %s2718 = smul.u32 19, %s27
          %s2720 = ssub.s32 2432, 2432
          %2721 = vsyncadd %s2711, %s2720
          %s2722 = smul.addr %s2718, 128
          %s2723 = scalar_lea.hbm %s11, %s2722
          %s2724 = sshll.u32 %s2714, 4
          %s2725 = int_to_ptr.vmem [resolvable:$true] %s2724
          %2730 = dma.vmem_to_hbm [thread:$0]  %s2725, 2432, %s2723, %s2711, 128, 128, 8
        $region80: #{tpu_custom_call.1} parent=63 // pred_fallthru
          _
      $region64: #{tpu_custom_call.1} parent=5 // pred_fallthru
        _
      %p2731 = scmp.le.s32.totalorder 2, %s22
      // Predicated region
      $region81: #{tpu_custom_call.1} parent=5 // pred_check
        %p2732 = pneg %p2731
      $region82: #{tpu_custom_call.1} parent=5 // pred_check_branch
        %2734 = sbr.rel (%p2732) target = $region84
      $region83: #{tpu_custom_call.1} parent=5 // pred_region
        %s2735 = ssub.s32 %s22, 2
        // Predicated region
        $region85: #{tpu_custom_call.1} parent=83 // pred_check
          %p2736 = pneg %p292
        $region86: #{tpu_custom_call.1} parent=83 // pred_check_branch
          %2738 = sbr.rel (%p2736) target = $region88
        $region87: #{tpu_custom_call.1} parent=83 // pred_region
          %s2739 = sand.u32 %s277, 1
          %s2740 = scalar_lea.sflag [#allocation4], %s2739
          %s2741 = sand.u32 %s277, 1
          %s2742 = smul.addr %s2741, 152
          %s2743 = scalar_lea.vmem [#allocation8], %s2742
          %2744 = dma.done %s2740, 2432
        $region88: #{tpu_custom_call.1} parent=83 // pred_fallthru
          _
      $region84: #{tpu_custom_call.1} parent=5 // pred_fallthru
        _
    $region6: #{tpu_custom_call.1} parent=1 // loop_footer
      %s26 = sadd.s32 1, %s22
    $region7: #{tpu_custom_call.1} parent=1 // loop_footer_branch
      %21 = sbr.rel target = $region3
    $region8: #{tpu_custom_call.1} parent=1 // loop_exit
      _
    %2745 = vsyncpa [#allocation3], 1
    %s2746 = scalar_lea.sflag [#allocation3], 1
    %2747 = vsyncpa %s2746, 1
    %2748 = vsyncpa [#allocation6], 1
    %2749 = vsyncpa [#allocation4], 1
    %s2750 = scalar_lea.sflag [#allocation4], 1
    %2751 = vsyncpa %s2750, 1

</llo_original>
